<compile_context>
chip_gen: v7x
topology: tpu7x:2x2x1
jax: 0.10.0
libtpu: 0.0.40
codegen_flags: <defaults>
</compile_context>

<pallas_src>
import numpy as np
import jax
import jax.numpy as jnp
from jax.experimental import pallas as pl
from jax.experimental.pallas import tpu as pltpu

# ---------------------------------------------------------------------------
# constants from the PyTorch module (torchvision Normalize)
# ---------------------------------------------------------------------------
MEAN = (0.485, 0.456, 0.406)
STD = (0.229, 0.224, 0.225)

C_IN = 3     # RGB
C_HID = 8    # hidden width of the synthetic matting head


def _make_kernel(w1f, b1f, signs, neg_b2, background_rgb):
    """Builds the fused Pallas kernel body.

    w1f:   list[C_HID][C_IN] python floats  (normalization- and |w2|-folded
                                             3 -> C_HID weights)
    b1f:   list[C_HID] python floats        (folded biases, already scaled by |w2|)
    signs: list[C_HID] ints in {-1, 0, +1}  (sign of w2[k])
    neg_b2: python float (-b2)
    background_rgb: python float
    """

    def kernel(x_ref, o_ref):
        # x_ref / o_ref blocks: (C_IN, TH, W).  Channel / hidden loops unrolled.
        # Hoist the three channel loads out of the k-loop (loaded once, not 8x).
        x0 = x_ref[0]
        x1 = x_ref[1]
        x2 = x_ref[2]

        # layer 1 (+ folded normalization, + folded |w2|) interleaved with the
        # layer-2 add/sub accumulation of -z.  Only ~2 (TH, W) temporaries live.
        neg_z = None
        for k in range(C_HID):
            if signs[k] == 0:
                continue
            acc = x0 * w1f[k][0]
            acc = acc + x1 * w1f[k][1]
            acc = acc + x2 * w1f[k][2]
            acc = acc + b1f[k]
            hk = jnp.maximum(acc, 0.0)
            if neg_z is None:
                neg_z = -hk if signs[k] > 0 else hk
            else:
                neg_z = neg_z - hk if signs[k] > 0 else neg_z + hk
        if neg_z is None:                       # degenerate all-zero w2
            neg_z = x0 * 0.0
        neg_z = neg_z + neg_b2

        # numerically stable sigmoid: clamp -z so exp() never overflows to inf,
        # exact reciprocal (kernel is VALU/HBM-bound, not EUP-bound).
        neg_z = jnp.minimum(neg_z, 60.0)
        alpha = pl.reciprocal(1.0 + jnp.exp(neg_z))        # (TH, W)

        # composite against constant background (return_type='matting');
        # input planes re-read from VMEM here (cheap vld, short live range).
        bg_term = (1.0 - alpha) * background_rgb
        for c in range(C_IN):
            o_ref[c] = x_ref[c] * alpha + bg_term

    return kernel


def _physical_vmem_bytes():
    """Physical VMEM of the current chip (64 MiB on v7x, 128 MiB on v5e/v6e)."""
    try:
        return int(pltpu.get_tpu_info().vmem_capacity_bytes)
    except Exception:
        return 64 << 20      # conservative fallback (v7x-sized)


def _choose_tile_h(h, w, *, itemsize=4, vmem_budget_bytes=24 << 20,
                   min_steps=4):
    """Largest tile_h (multiple of 8, dividing h) whose double-buffered
    in+out blocks (4 * block_bytes) fit the VMEM budget.  Purely byte-based
    (no fixed row cap).  Prefers >= min_steps grid steps so each of v7x's two
    TensorCores keeps >= 2 pipelined steps; falls back to 2 / 1 steps only
    for tiny images."""
    divisors = [t for t in range(8, h + 1, 8)
                if h % t == 0
                and 4 * C_IN * t * w * itemsize <= vmem_budget_bytes]
    if not divisors:
        return 8
    for steps in (min_steps, 2, 1):
        cand = [t for t in divisors if h // t >= steps]
        if cand:
            return max(cand)
    return min(divisors)


def style_matte_matting(input_image, w1, b1, w2, b2,
                        background_rgb=1.0, tile_h=None):
    """Pallas-backed equivalent of StyleMatteEngine.forward(return_type='matting').

    input_image: (3, H, W) float32 in [0, 1], H % 8 == 0, W % 128 == 0.
    Returns:     (3, H, W) float32 matting image.
    """
    c, h, w = input_image.shape
    assert c == C_IN
    assert h % 8 == 0 and w % 128 == 0, "H must be 8-aligned, W 128-aligned"

    if tile_h is None:
        tile_h = _choose_tile_h(h, w)
    assert tile_h % 8 == 0 and h % tile_h == 0, \
        "tile_h must be a multiple of 8 and divide H"

    # ---- trace-time weight folding (all python floats) ----
    # (x - mean) / std fed to w1  ==  x fed to w1' = w1/std,
    #                                 b1' = b1 - sum_c w1[k,c]*mean[c]/std[c]
    # relu(a) * w2  ==  sign(w2) * relu(a * |w2|)   since |w2| >= 0,
    # so |w2[k]| scales w1'/b1' and layer-2 becomes pure signed accumulation.
    w1_np = np.asarray(w1, np.float64)
    b1_np = np.asarray(b1, np.float64)
    w2_np = np.asarray(w2, np.float64)
    inv_std = np.asarray(STD, np.float64) ** -1
    mean = np.asarray(MEAN, np.float64)
    w1_fold = w1_np * inv_std[None, :]
    b1_fold = b1_np - (w1_np * (mean * inv_std)[None, :]).sum(axis=1)
    abs_w2 = np.abs(w2_np)
    w1_fold = w1_fold * abs_w2[:, None]
    b1_fold = b1_fold * abs_w2
    signs = [int(s) for s in np.sign(w2_np)]

    w1_l = [[float(v) for v in row] for row in w1_fold]
    b1_l = [float(v) for v in b1_fold]
    neg_b2 = -float(b2)

    kernel = _make_kernel(w1_l, b1_l, signs, neg_b2, float(background_rgb))

    block = (C_IN, tile_h, w)
    block_bytes = C_IN * tile_h * w * 4
    # explicit VMEM limit: 2 in + 2 out buffers + headroom, capped by the
    # chip's physical VMEM (64 MiB on v7x) minus a safety margin.
    phys_cap = _physical_vmem_bytes() - (8 << 20)
    vmem_limit = int(min(phys_cap, max(32 << 20, 5 * block_bytes)))

    grid = (h // tile_h,)

    return pl.pallas_call(
        kernel,
        out_shape=jax.ShapeDtypeStruct((C_IN, h, w), jnp.float32),
        grid=grid,
        in_specs=[pl.BlockSpec(block, lambda i: (0, i, 0))],
        out_specs=pl.BlockSpec(block, lambda i: (0, i, 0)),
        compiler_params=pltpu.CompilerParams(
            dimension_semantics=("parallel",),
            vmem_limit_bytes=vmem_limit),
    )(input_image)


def _reference(input_image, w1, b1, w2, b2, background_rgb=1.0):
    """Pure-JAX reference for correctness checking (un-folded math)."""
    mean = jnp.asarray(MEAN, jnp.float32).reshape(3, 1, 1)
    std = jnp.asarray(STD, jnp.float32).reshape(3, 1, 1)
    xn = (input_image - mean) / std                              # (3, H, W)
    h = jnp.einsum("kc,chw->khw", w1, xn) + b1.reshape(-1, 1, 1)
    h = jnp.maximum(h, 0.0)
    z = jnp.einsum("k,khw->hw", w2, h) + b2
    alpha = jax.nn.sigmoid(z)[None]                              # (1, H, W)
    return input_image * alpha + (1.0 - alpha) * background_rgb


if __name__ == "__main__":
    key = jax.random.PRNGKey(0)
    k_img, k_w1, k_b1, k_w2, k_b2 = jax.random.split(key, 5)

    # deterministic synthetic weights for the stand-in matting head
    w1 = jax.random.normal(k_w1, (C_HID, C_IN), jnp.float32) * 0.5
    b1 = jax.random.normal(k_b1, (C_HID,), jnp.float32) * 0.1
    w2 = jax.random.normal(k_w2, (C_HID,), jnp.float32) * 0.5
    b2 = jax.random.normal(k_b2, (), jnp.float32) * 0.1

    for (H, W) in [(256, 256), (16, 128)]:
        img = jax.random.uniform(k_img, (C_IN, H, W), jnp.float32)   # [0, 1]

        out = style_matte_matting(img, w1, b1, w2, b2, background_rgb=1.0)
        out = jax.block_until_ready(out)

        ref = _reference(img, w1, b1, w2, b2, background_rgb=1.0)
        assert out.shape == (C_IN, H, W) and out.dtype == jnp.float32
        # exact sigmoid in-kernel now; residual diff is folded-weight rounding
        np.testing.assert_allclose(np.asarray(out), np.asarray(ref),
                                   rtol=1e-4, atol=1e-4)

    print("KERNEL_OK")
</pallas_src>

<mosaic_0001>
module attributes {stable_mosaic.version = 11 : i64} {
  func.func @kernel(%arg0: i32, %arg1: memref<3x64x256xf32, #tpu.memory_space<vmem>>, %arg2: memref<3x64x256xf32, #tpu.memory_space<vmem>>) attributes {dimension_semantics = [#tpu.dimension_semantics<parallel>], iteration_bounds = array<i64: 4>, scalar_prefetch = 0 : i64, scratch_operands = 0 : i64, tpu.core_type = #tpu.core_type<tc>, window_params = [{transform_indices = @transform_0, window_bounds = array<i64: 3, 64, 256>}, {transform_indices = @transform_1, window_bounds = array<i64: 3, 64, 256>}]} {
    %c0 = arith.constant 0 : index
    %c0_0 = arith.constant 0 : index
    %c0_1 = arith.constant 0 : index
    %0 = vector.load %arg1[%c0, %c0_0, %c0_1] : memref<3x64x256xf32, #tpu.memory_space<vmem>>, vector<1x64x256xf32>
    %1 = vector.shape_cast %0 : vector<1x64x256xf32> to vector<64x256xf32>
    %c1 = arith.constant 1 : index
    %c0_2 = arith.constant 0 : index
    %c0_3 = arith.constant 0 : index
    %2 = vector.load %arg1[%c1, %c0_2, %c0_3] : memref<3x64x256xf32, #tpu.memory_space<vmem>>, vector<1x64x256xf32>
    %3 = vector.shape_cast %2 : vector<1x64x256xf32> to vector<64x256xf32>
    %c2 = arith.constant 2 : index
    %c0_4 = arith.constant 0 : index
    %c0_5 = arith.constant 0 : index
    %4 = vector.load %arg1[%c2, %c0_4, %c0_5] : memref<3x64x256xf32, #tpu.memory_space<vmem>>, vector<1x64x256xf32>
    %5 = vector.shape_cast %4 : vector<1x64x256xf32> to vector<64x256xf32>
    %cst = arith.constant -1.658373 : f32
    %6 = vector.broadcast %cst : f32 to vector<64x256xf32>
    %7 = arith.mulf %1, %6 : vector<64x256xf32>
    %cst_6 = arith.constant -1.41303396 : f32
    %8 = vector.broadcast %cst_6 : f32 to vector<64x256xf32>
    %9 = arith.mulf %3, %8 : vector<64x256xf32>
    %10 = arith.addf %7, %9 : vector<64x256xf32>
    %cst_7 = arith.constant 0.142041028 : f32
    %11 = vector.broadcast %cst_7 : f32 to vector<64x256xf32>
    %12 = arith.mulf %5, %11 : vector<64x256xf32>
    %13 = arith.addf %10, %12 : vector<64x256xf32>
    %cst_8 = arith.constant 1.43127644 : f32
    %14 = vector.broadcast %cst_8 : f32 to vector<64x256xf32>
    %15 = arith.addf %13, %14 : vector<64x256xf32>
    %cst_9 = arith.constant 0.000000e+00 : f32
    %16 = vector.broadcast %cst_9 : f32 to vector<64x256xf32>
    %17 = arith.maximumf %15, %16 : vector<64x256xf32>
    %cst_10 = arith.constant -0.241156772 : f32
    %18 = vector.broadcast %cst_10 : f32 to vector<64x256xf32>
    %19 = arith.mulf %1, %18 : vector<64x256xf32>
    %cst_11 = arith.constant -0.531344295 : f32
    %20 = vector.broadcast %cst_11 : f32 to vector<64x256xf32>
    %21 = arith.mulf %3, %20 : vector<64x256xf32>
    %22 = arith.addf %19, %21 : vector<64x256xf32>
    %cst_12 = arith.constant -0.81818217 : f32
    %23 = vector.broadcast %cst_12 : f32 to vector<64x256xf32>
    %24 = arith.mulf %5, %23 : vector<64x256xf32>
    %25 = arith.addf %22, %24 : vector<64x256xf32>
    %cst_13 = arith.constant 0.733766794 : f32
    %26 = vector.broadcast %cst_13 : f32 to vector<64x256xf32>
    %27 = arith.addf %25, %26 : vector<64x256xf32>
    %cst_14 = arith.constant 0.000000e+00 : f32
    %28 = vector.broadcast %cst_14 : f32 to vector<64x256xf32>
    %29 = arith.maximumf %27, %28 : vector<64x256xf32>
    %30 = arith.subf %17, %29 : vector<64x256xf32>
    %cst_15 = arith.constant -2.10850906 : f32
    %31 = vector.broadcast %cst_15 : f32 to vector<64x256xf32>
    %32 = arith.mulf %1, %31 : vector<64x256xf32>
    %cst_16 = arith.constant 0.557874858 : f32
    %33 = vector.broadcast %cst_16 : f32 to vector<64x256xf32>
    %34 = arith.mulf %3, %33 : vector<64x256xf32>
    %35 = arith.addf %32, %34 : vector<64x256xf32>
    %cst_17 = arith.constant -2.44935894 : f32
    %36 = vector.broadcast %cst_17 : f32 to vector<64x256xf32>
    %37 = arith.mulf %5, %36 : vector<64x256xf32>
    %38 = arith.addf %35, %37 : vector<64x256xf32>
    %cst_18 = arith.constant 1.7282263 : f32
    %39 = vector.broadcast %cst_18 : f32 to vector<64x256xf32>
    %40 = arith.addf %38, %39 : vector<64x256xf32>
    %cst_19 = arith.constant 0.000000e+00 : f32
    %41 = vector.broadcast %cst_19 : f32 to vector<64x256xf32>
    %42 = arith.maximumf %40, %41 : vector<64x256xf32>
    %43 = arith.subf %30, %42 : vector<64x256xf32>
    %cst_20 = arith.constant 1.87907302 : f32
    %44 = vector.broadcast %cst_20 : f32 to vector<64x256xf32>
    %45 = arith.mulf %1, %44 : vector<64x256xf32>
    %cst_21 = arith.constant -0.170956343 : f32
    %46 = vector.broadcast %cst_21 : f32 to vector<64x256xf32>
    %47 = arith.mulf %3, %46 : vector<64x256xf32>
    %48 = arith.addf %45, %47 : vector<64x256xf32>
    %cst_22 = arith.constant 0.865482389 : f32
    %49 = vector.broadcast %cst_22 : f32 to vector<64x256xf32>
    %50 = arith.mulf %5, %49 : vector<64x256xf32>
    %51 = arith.addf %48, %50 : vector<64x256xf32>
    %cst_23 = arith.constant -1.21596479 : f32
    %52 = vector.broadcast %cst_23 : f32 to vector<64x256xf32>
    %53 = arith.addf %51, %52 : vector<64x256xf32>
    %cst_24 = arith.constant 0.000000e+00 : f32
    %54 = vector.broadcast %cst_24 : f32 to vector<64x256xf32>
    %55 = arith.maximumf %53, %54 : vector<64x256xf32>
    %56 = arith.addf %43, %55 : vector<64x256xf32>
    %cst_25 = arith.constant -3.36101127 : f32
    %57 = vector.broadcast %cst_25 : f32 to vector<64x256xf32>
    %58 = arith.mulf %1, %57 : vector<64x256xf32>
    %cst_26 = arith.constant -1.9772017 : f32
    %59 = vector.broadcast %cst_26 : f32 to vector<64x256xf32>
    %60 = arith.mulf %3, %59 : vector<64x256xf32>
    %61 = arith.addf %58, %60 : vector<64x256xf32>
    %cst_27 = arith.constant -0.98066163 : f32
    %62 = vector.broadcast %cst_27 : f32 to vector<64x256xf32>
    %63 = arith.mulf %5, %62 : vector<64x256xf32>
    %64 = arith.addf %61, %63 : vector<64x256xf32>
    %cst_28 = arith.constant 2.97491264 : f32
    %65 = vector.broadcast %cst_28 : f32 to vector<64x256xf32>
    %66 = arith.addf %64, %65 : vector<64x256xf32>
    %cst_29 = arith.constant 0.000000e+00 : f32
    %67 = vector.broadcast %cst_29 : f32 to vector<64x256xf32>
    %68 = arith.maximumf %66, %67 : vector<64x256xf32>
    %69 = arith.addf %56, %68 : vector<64x256xf32>
    %cst_30 = arith.constant 0.433096826 : f32
    %70 = vector.broadcast %cst_30 : f32 to vector<64x256xf32>
    %71 = arith.mulf %1, %70 : vector<64x256xf32>
    %cst_31 = arith.constant -1.19022822 : f32
    %72 = vector.broadcast %cst_31 : f32 to vector<64x256xf32>
    %73 = arith.mulf %3, %72 : vector<64x256xf32>
    %74 = arith.addf %71, %73 : vector<64x256xf32>
    %cst_32 = arith.constant -6.894370e-02 : f32
    %75 = vector.broadcast %cst_32 : f32 to vector<64x256xf32>
    %76 = arith.mulf %5, %75 : vector<64x256xf32>
    %77 = arith.addf %74, %76 : vector<64x256xf32>
    %cst_33 = arith.constant 0.36152944 : f32
    %78 = vector.broadcast %cst_33 : f32 to vector<64x256xf32>
    %79 = arith.addf %77, %78 : vector<64x256xf32>
    %cst_34 = arith.constant 0.000000e+00 : f32
    %80 = vector.broadcast %cst_34 : f32 to vector<64x256xf32>
    %81 = arith.maximumf %79, %80 : vector<64x256xf32>
    %82 = arith.subf %69, %81 : vector<64x256xf32>
    %cst_35 = arith.constant -1.52677953 : f32
    %83 = vector.broadcast %cst_35 : f32 to vector<64x256xf32>
    %84 = arith.mulf %1, %83 : vector<64x256xf32>
    %cst_36 = arith.constant -3.19787335 : f32
    %85 = vector.broadcast %cst_36 : f32 to vector<64x256xf32>
    %86 = arith.mulf %3, %85 : vector<64x256xf32>
    %87 = arith.addf %84, %86 : vector<64x256xf32>
    %cst_37 = arith.constant -1.79761851 : f32
    %88 = vector.broadcast %cst_37 : f32 to vector<64x256xf32>
    %89 = arith.mulf %5, %88 : vector<64x256xf32>
    %90 = arith.addf %87, %89 : vector<64x256xf32>
    %cst_38 = arith.constant 2.97057486 : f32
    %91 = vector.broadcast %cst_38 : f32 to vector<64x256xf32>
    %92 = arith.addf %90, %91 : vector<64x256xf32>
    %cst_39 = arith.constant 0.000000e+00 : f32
    %93 = vector.broadcast %cst_39 : f32 to vector<64x256xf32>
    %94 = arith.maximumf %92, %93 : vector<64x256xf32>
    %95 = arith.subf %82, %94 : vector<64x256xf32>
    %cst_40 = arith.constant -0.209348634 : f32
    %96 = vector.broadcast %cst_40 : f32 to vector<64x256xf32>
    %97 = arith.mulf %1, %96 : vector<64x256xf32>
    %cst_41 = arith.constant 0.884207189 : f32
    %98 = vector.broadcast %cst_41 : f32 to vector<64x256xf32>
    %99 = arith.mulf %3, %98 : vector<64x256xf32>
    %100 = arith.addf %97, %99 : vector<64x256xf32>
    %cst_42 = arith.constant 5.374560e-01 : f32
    %101 = vector.broadcast %cst_42 : f32 to vector<64x256xf32>
    %102 = arith.mulf %5, %101 : vector<64x256xf32>
    %103 = arith.addf %100, %102 : vector<64x256xf32>
    %cst_43 = arith.constant -0.542301476 : f32
    %104 = vector.broadcast %cst_43 : f32 to vector<64x256xf32>
    %105 = arith.addf %103, %104 : vector<64x256xf32>
    %cst_44 = arith.constant 0.000000e+00 : f32
    %106 = vector.broadcast %cst_44 : f32 to vector<64x256xf32>
    %107 = arith.maximumf %105, %106 : vector<64x256xf32>
    %108 = arith.addf %95, %107 : vector<64x256xf32>
    %cst_45 = arith.constant 0.102088533 : f32
    %109 = vector.broadcast %cst_45 : f32 to vector<64x256xf32>
    %110 = arith.addf %108, %109 : vector<64x256xf32>
    %cst_46 = arith.constant 6.000000e+01 : f32
    %111 = vector.broadcast %cst_46 : f32 to vector<64x256xf32>
    %112 = arith.minimumf %110, %111 : vector<64x256xf32>
    %113 = math.exp %112 : vector<64x256xf32>
    %cst_47 = arith.constant 1.000000e+00 : f32
    %114 = vector.broadcast %cst_47 : f32 to vector<64x256xf32>
    %115 = arith.addf %114, %113 : vector<64x256xf32>
    %116 = tpu.reciprocal %115 : vector<64x256xf32> -> vector<64x256xf32>
    %cst_48 = arith.constant 1.000000e+00 : f32
    %117 = vector.broadcast %cst_48 : f32 to vector<64x256xf32>
    %118 = arith.subf %117, %116 : vector<64x256xf32>
    %cst_49 = arith.constant 1.000000e+00 : f32
    %119 = vector.broadcast %cst_49 : f32 to vector<64x256xf32>
    %120 = arith.mulf %118, %119 : vector<64x256xf32>
    %c0_50 = arith.constant 0 : index
    %c0_51 = arith.constant 0 : index
    %c0_52 = arith.constant 0 : index
    %121 = vector.load %arg1[%c0_50, %c0_51, %c0_52] : memref<3x64x256xf32, #tpu.memory_space<vmem>>, vector<1x64x256xf32>
    %122 = vector.shape_cast %121 : vector<1x64x256xf32> to vector<64x256xf32>
    %123 = arith.mulf %122, %116 : vector<64x256xf32>
    %124 = arith.addf %123, %120 : vector<64x256xf32>
    %c0_53 = arith.constant 0 : index
    %c0_54 = arith.constant 0 : index
    %c0_55 = arith.constant 0 : index
    %125 = vector.load %arg2[%c0_53, %c0_54, %c0_55] : memref<3x64x256xf32, #tpu.memory_space<vmem>>, vector<1x64x256xf32>
    %126 = vector.shape_cast %125 : vector<1x64x256xf32> to vector<64x256xf32>
    %127 = vector.shape_cast %124 : vector<64x256xf32> to vector<1x64x256xf32>
    tpu.vector_store %arg2[%c0_53, %c0_54, %c0_55], %127 {strides = array<i32>} : memref<3x64x256xf32, #tpu.memory_space<vmem>>, vector<1x64x256xf32>,
    %c1_56 = arith.constant 1 : index
    %c0_57 = arith.constant 0 : index
    %c0_58 = arith.constant 0 : index
    %128 = vector.load %arg1[%c1_56, %c0_57, %c0_58] : memref<3x64x256xf32, #tpu.memory_space<vmem>>, vector<1x64x256xf32>
    %129 = vector.shape_cast %128 : vector<1x64x256xf32> to vector<64x256xf32>
    %130 = arith.mulf %129, %116 : vector<64x256xf32>
    %131 = arith.addf %130, %120 : vector<64x256xf32>
    %c1_59 = arith.constant 1 : index
    %c0_60 = arith.constant 0 : index
    %c0_61 = arith.constant 0 : index
    %132 = vector.load %arg2[%c1_59, %c0_60, %c0_61] : memref<3x64x256xf32, #tpu.memory_space<vmem>>, vector<1x64x256xf32>
    %133 = vector.shape_cast %132 : vector<1x64x256xf32> to vector<64x256xf32>
    %134 = vector.shape_cast %131 : vector<64x256xf32> to vector<1x64x256xf32>
    tpu.vector_store %arg2[%c1_59, %c0_60, %c0_61], %134 {strides = array<i32>} : memref<3x64x256xf32, #tpu.memory_space<vmem>>, vector<1x64x256xf32>,
    %c2_62 = arith.constant 2 : index
    %c0_63 = arith.constant 0 : index
    %c0_64 = arith.constant 0 : index
    %135 = vector.load %arg1[%c2_62, %c0_63, %c0_64] : memref<3x64x256xf32, #tpu.memory_space<vmem>>, vector<1x64x256xf32>
    %136 = vector.shape_cast %135 : vector<1x64x256xf32> to vector<64x256xf32>
    %137 = arith.mulf %136, %116 : vector<64x256xf32>
    %138 = arith.addf %137, %120 : vector<64x256xf32>
    %c2_65 = arith.constant 2 : index
    %c0_66 = arith.constant 0 : index
    %c0_67 = arith.constant 0 : index
    %139 = vector.load %arg2[%c2_65, %c0_66, %c0_67] : memref<3x64x256xf32, #tpu.memory_space<vmem>>, vector<1x64x256xf32>
    %140 = vector.shape_cast %139 : vector<1x64x256xf32> to vector<64x256xf32>
    %141 = vector.shape_cast %138 : vector<64x256xf32> to vector<1x64x256xf32>
    tpu.vector_store %arg2[%c2_65, %c0_66, %c0_67], %141 {strides = array<i32>} : memref<3x64x256xf32, #tpu.memory_space<vmem>>, vector<1x64x256xf32>,
    return
  }
  func.func @transform_0(%arg0: i32) -> (i32, i32, i32) {
    %c0_i32 = arith.constant 0 : i32
    %c0_i32_0 = arith.constant 0 : i32
    %c0_i32_1 = arith.constant 0 : i32
    return %c0_i32, %arg0, %c0_i32_0 : i32, i32, i32
  }
  func.func @transform_1(%arg0: i32) -> (i32, i32, i32) {
    %c0_i32 = arith.constant 0 : i32
    %c0_i32_0 = arith.constant 0 : i32
    %c0_i32_1 = arith.constant 0 : i32
    return %c0_i32, %arg0, %c0_i32_0 : i32, i32, i32
  }
}

</mosaic_0001>

<llo_original>
// kernel: tpu_custom_call.1
$region0: #{tpu_custom_call.1}
  #allocation0 [shape = 'u32[]', space=smem, size = 0x4, offset = 0x4, fixed_abs, tag = 'smem constant byte address 0x4 - core index']
  #allocation1 [shape = 'u32[144,128]{1,0:T(1,128)}', space=vmem, size = 0x12000, scoped, tag = 'internal scratch']
  #allocation6 [shape = 's32[]', space=sflag, size = 0x4, offset = 0, fixed_abs, tag = 'sflag constant byte address 0x0 - dummy sync flag']
  #allocation8 [shape = 's32[]', space=sflag, size = 0x4, offset = 0, fixed_abs, tag = 'sflag constant byte address 0x0 - dummy sync flag']
  %s0 = inlined_call_operand.hbm [shape: f32[3,256,256], index: 0, kind: input, shape index: {}]
  %s1 = inlined_call_operand.hbm [shape: f32[3,256,256], index: 1, kind: output, shape index: {}]
  %s2 = sld [smem:[#allocation0]]
  $region41: #{tpu_custom_call.1} parent=0
    _
  %s4 = ssub.s32 1, %s2
  %s5 = scalar_select 0, %s4, %s2
  $region1: #{tpu_custom_call.1} parent=0
    #allocation2 [shape = 'u8[393216]{0}', space=vmem, size = 0x60000, scoped, tag = 'input window, operand 0']
    #allocation3 [shape = 's32[2]{0}', space=sflag, size = 0x8, scoped, tag = 'scoped memory for tpu_custom_call.1']
    #allocation4 [shape = 's32[2]{0}', space=sflag, size = 0x8, scoped, tag = 'scoped memory for tpu_custom_call.1']
    #allocation5 [shape = 'u8[393216]{0}', space=vmem, size = 0x60000, scoped, tag = 'output window, operand 0']
    %6 = vsyncpa [#allocation3], 0
    %s7 = scalar_lea.sflag [#allocation3], 1
    %8 = vsyncpa %s7, 0
    %9 = vsyncpa [#allocation4], 0
    %s10 = scalar_lea.sflag [#allocation4], 1
    %11 = vsyncpa %s10, 0
    loop: start=0, step=1, limit=6
    $region2: #{tpu_custom_call.1} parent=1 // loop_pre_header
      _
    $region3: #{tpu_custom_call.1} parent=1 // loop_header
      %s13 = sphi 0, %s17
      %p14 = scmp.ge.s32.totalorder %s13, 6
      %s23 = sphi 0, %s25
      %s26 = sphi 0, %s23
      %s27 = sphi 0, %s26
      %s43 = sphi 0, %s27
      %s49 = sphi 0, %s51
      %s52 = sphi 0, %s49
      %s53 = sphi 0, %s52
      %s69 = sphi 0, %s53
    $region4: #{tpu_custom_call.1} parent=1 // loop_header_branch
      %16 = sbr.rel (%p14) target = $region8
    $region5: #{tpu_custom_call.1} parent=1 // loop_body
      %s18 = ssub.s32 %s13, 1
      %s19 = ssub.s32 %s13, 2
      %s20 = sadd.s32 %s13, 1
      %s21 = ssub.s32 %s13, %s20
      %p22 = scmp.eq.s32.totalorder %s21, 0
      %s24 = sadd.s32 %s23, 1
      %s25 = scalar_select %p22, %s23, %s24
      %p28 = pneg %p22
      %p29 = scmp.eq.s32.totalorder %s13, 3
      %p30 = por %p28, %p29
      %p31 = scmp.ne.s32.totalorder %s23, %s26
      %p32 = scmp.eq.s32.totalorder %s13, 0
      %p33 = por %p31, %p32
      %p34 = scmp.ne.s32.totalorder %s23, %s26
      %p35 = scmp.eq.s32.totalorder %s18, 3
      %p36 = por %p34, %p35
      %p37 = scmp.ne.s32.totalorder %s26, %s27
      %p38 = scmp.eq.s32.totalorder %s18, 0
      %p39 = por %p37, %p38
      %p40 = scmp.ne.s32.totalorder %s26, %s27
      %p41 = scmp.eq.s32.totalorder %s19, 3
      %p42 = por %p40, %p41
      %p44 = scmp.ne.s32.totalorder %s27, %s43
      %p45 = scmp.eq.s32.totalorder %s19, 0
      %p46 = por %p44, %p45
      %s47 = ssub.s32 %s13, %s20
      %p48 = scmp.eq.s32.totalorder %s47, 0
      %s50 = sadd.s32 %s49, 1
      %s51 = scalar_select %p48, %s49, %s50
      %p54 = pneg %p48
      %p55 = scmp.eq.s32.totalorder %s13, 3
      %p56 = por %p54, %p55
      %p57 = scmp.ne.s32.totalorder %s49, %s52
      %p58 = scmp.eq.s32.totalorder %s13, 0
      %p59 = por %p57, %p58
      %p60 = scmp.ne.s32.totalorder %s49, %s52
      %p61 = scmp.eq.s32.totalorder %s18, 3
      %p62 = por %p60, %p61
      %p63 = scmp.ne.s32.totalorder %s52, %s53
      %p64 = scmp.eq.s32.totalorder %s18, 0
      %p65 = por %p63, %p64
      %p66 = scmp.ne.s32.totalorder %s52, %s53
      %p67 = scmp.eq.s32.totalorder %s19, 3
      %p68 = por %p66, %p67
      %p70 = scmp.ne.s32.totalorder %s53, %s69
      %p71 = scmp.eq.s32.totalorder %s19, 0
      %p72 = por %p70, %p71
      %p73 = scmp.le.s32.totalorder 1, %s13
      %p74 = scmp.lt.s32.totalorder %s13, 5
      %p75 = pnand %p73, %p74
      %p76 = pneg %p75
      // Predicated region
      $region9: #{tpu_custom_call.1} parent=5 // pred_check
        _
      $region10: #{tpu_custom_call.1} parent=5 // pred_check_branch
        %78 = sbr.rel (%p75) target = $region12
      $region11: #{tpu_custom_call.1} parent=5 // pred_region
        %s79 = ssub.s32 %s13, 1
      $region12: #{tpu_custom_call.1} parent=5 // pred_fallthru
        _
      %p80 = scmp.lt.s32.totalorder %s13, 4
      // Predicated region
      $region13: #{tpu_custom_call.1} parent=5 // pred_check
        %p81 = pneg %p80
      $region14: #{tpu_custom_call.1} parent=5 // pred_check_branch
        %83 = sbr.rel (%p81) target = $region16
      $region15: #{tpu_custom_call.1} parent=5 // pred_region
        // Predicated region
        $region17: #{tpu_custom_call.1} parent=15 // pred_check
          %p84 = pneg %p33
        $region18: #{tpu_custom_call.1} parent=15 // pred_check_branch
          %86 = sbr.rel (%p84) target = $region20
        $region19: #{tpu_custom_call.1} parent=15 // pred_region
          #allocation7 [shape = 'u32[6]{0}', space=smem, size = 0x18, scoped, tag = 'DMA stride descriptor']
          %s87 = sand.u32 %s23, 1
          %s88 = scalar_lea.sflag [#allocation3], %s87
          %s89 = sand.u32 %s23, 1
          %s90 = smul.addr %s89, 384
          %s91 = scalar_lea.vmem [#allocation2], %s90
          %s92 = smul.u32 8, %s13
          %s94 = ssub.s32 6144, 6144
          %95 = vsyncadd %s88, %s94
          %s96 = smul.addr %s92, 2
          %s97 = smul.addr %s96, 128
          %s98 = scalar_lea.hbm %s0, %s97
          %s100 = sshll.u32 1, 14
          %s101 = sxor.u32 4294967295, %s100
          %s103 = sld [smem:[#allocation0]]
          %s104 = sadd.s32 2, %s103
          %s106 = sshll.u32 7, 26
          %s107 = sxor.u32 4294967295, %s106
          %s108 = sand.u32 0, %s107
          %s109 = sshll.u32 %s104, 26
          %s110 = sor.u32 %s108, %s109
          %s111 = sshll.u32 %s91, 4
          %s112 = int_to_ptr.vmem [resolvable:$true] %s111
          %118 = sst [smem:[#allocation7]] 8192
          %s119 = scalar_lea.smem [#allocation7], 1
          %120 = sst [smem:[%s119]] 2048
          %s121 = scalar_lea.smem [#allocation7], 2
          %122 = sst [smem:[%s121]] 8
          %s123 = scalar_lea.smem [#allocation7], 3
          %124 = sst [smem:[%s123]] 256
          %s125 = scalar_lea.smem [#allocation7], 4
          %126 = sst [smem:[%s125]] 256
          %s127 = scalar_lea.smem [#allocation7], 5
          %128 = sst [smem:[%s127]] 16
          %130 = dma.general %s98, 6144, %s112, %s88, [#allocation6], [#allocation7], %s110, 0
        $region20: #{tpu_custom_call.1} parent=15 // pred_fallthru
          _
      $region16: #{tpu_custom_call.1} parent=5 // pred_fallthru
        _
      %p131 = scmp.le.s32.totalorder 1, %s13
      %p132 = scmp.lt.s32.totalorder %s13, 5
      %p133 = pnand %p131, %p132
      %p134 = pneg %p133
      // Predicated region
      $region21: #{tpu_custom_call.1} parent=5 // pred_check
        _
      $region22: #{tpu_custom_call.1} parent=5 // pred_check_branch
        %136 = sbr.rel (%p133) target = $region24
      $region23: #{tpu_custom_call.1} parent=5 // pred_region
        %s137 = ssub.s32 %s13, 1
        %s138 = sand.u32 %s26, 1
        %s139 = scalar_lea.sflag [#allocation3], %s138
        %s140 = sand.u32 %s26, 1
        %s141 = smul.addr %s140, 384
        %s142 = scalar_lea.vmem [#allocation2], %s141
        // Predicated region
        $region25: #{tpu_custom_call.1} parent=23 // pred_check
          %p143 = pneg %p39
        $region26: #{tpu_custom_call.1} parent=23 // pred_check_branch
          %145 = sbr.rel (%p143) target = $region28
        $region27: #{tpu_custom_call.1} parent=23 // pred_region
          %146 = dma.done %s139, 6144
        $region28: #{tpu_custom_call.1} parent=23 // pred_fallthru
          _
        %s147 = sand.u32 %s26, 1
        %s148 = scalar_lea.sflag [#allocation3], %s147
        %s149 = sand.u32 %s26, 1
        %s150 = smul.addr %s149, 384
        %s151 = scalar_lea.vmem [#allocation2], %s150
        %p152 = pneg %p39
        %p153 = pneg %p36
        %p154 = pneg %p65
        %p155 = pneg %p62
        %s156 = sand.u32 %s52, 1
        %s157 = scalar_lea.sflag [#allocation4], %s156
        %s158 = sand.u32 %s52, 1
        %s159 = smul.addr %s158, 384
        %s160 = scalar_lea.vmem [#allocation5], %s159
        %s161 = smul.u32 8, %s18
        %s162 = smul.u32 8, %s18
        %v163 = vld [vmem:[%s142] sm:$0xff]
        %v164 = vld [vmem:[%s142 + $0x8] sm:$0xff]
        %v165 = vld [vmem:[%s142 + $0x10] sm:$0xff]
        %v166 = vld [vmem:[%s142 + $0x18] sm:$0xff]
        %v167 = vld [vmem:[%s142 + $0x20] sm:$0xff]
        %v168 = vld [vmem:[%s142 + $0x28] sm:$0xff]
        %v169 = vld [vmem:[%s142 + $0x30] sm:$0xff]
        %v170 = vld [vmem:[%s142 + $0x38] sm:$0xff]
        %v171 = vld [vmem:[%s142 + $0x40] sm:$0xff]
        %v172 = vld [vmem:[%s142 + $0x48] sm:$0xff]
        %v173 = vld [vmem:[%s142 + $0x50] sm:$0xff]
        %v174 = vld [vmem:[%s142 + $0x58] sm:$0xff]
        %v175 = vld [vmem:[%s142 + $0x60] sm:$0xff]
        %v176 = vld [vmem:[%s142 + $0x68] sm:$0xff]
        %v177 = vld [vmem:[%s142 + $0x70] sm:$0xff]
        %v178 = vld [vmem:[%s142 + $0x78] sm:$0xff]
        %s179 = scalar_lea.vmem %s142, 128 [#allocation2]
        %v180 = vld [vmem:[%s179] sm:$0xff]
        %v181 = vld [vmem:[%s179 + $0x8] sm:$0xff]
        %v182 = vld [vmem:[%s179 + $0x10] sm:$0xff]
        %v183 = vld [vmem:[%s179 + $0x18] sm:$0xff]
        %v184 = vld [vmem:[%s179 + $0x20] sm:$0xff]
        %v185 = vld [vmem:[%s179 + $0x28] sm:$0xff]
        %v186 = vld [vmem:[%s179 + $0x30] sm:$0xff]
        %v187 = vld [vmem:[%s179 + $0x38] sm:$0xff]
        %v188 = vld [vmem:[%s179 + $0x40] sm:$0xff]
        %v189 = vld [vmem:[%s179 + $0x48] sm:$0xff]
        %v190 = vld [vmem:[%s179 + $0x50] sm:$0xff]
        %v191 = vld [vmem:[%s179 + $0x58] sm:$0xff]
        %v192 = vld [vmem:[%s179 + $0x60] sm:$0xff]
        %v193 = vld [vmem:[%s179 + $0x68] sm:$0xff]
        %v194 = vld [vmem:[%s179 + $0x70] sm:$0xff]
        %v195 = vld [vmem:[%s179 + $0x78] sm:$0xff]
        %s196 = scalar_lea.vmem %s142, 256 [#allocation2]
        %v197 = vld [vmem:[%s196] sm:$0xff]
        %v198 = vld [vmem:[%s196 + $0x8] sm:$0xff]
        %v199 = vld [vmem:[%s196 + $0x10] sm:$0xff]
        %v200 = vld [vmem:[%s196 + $0x18] sm:$0xff]
        %v201 = vld [vmem:[%s196 + $0x20] sm:$0xff]
        %v202 = vld [vmem:[%s196 + $0x28] sm:$0xff]
        %v203 = vld [vmem:[%s196 + $0x30] sm:$0xff]
        %v204 = vld [vmem:[%s196 + $0x38] sm:$0xff]
        %v205 = vld [vmem:[%s196 + $0x40] sm:$0xff]
        %v206 = vld [vmem:[%s196 + $0x48] sm:$0xff]
        %v207 = vld [vmem:[%s196 + $0x50] sm:$0xff]
        %v208 = vld [vmem:[%s196 + $0x58] sm:$0xff]
        %v209 = vld [vmem:[%s196 + $0x60] sm:$0xff]
        %v210 = vld [vmem:[%s196 + $0x68] sm:$0xff]
        %v211 = vld [vmem:[%s196 + $0x70] sm:$0xff]
        %v212 = vld [vmem:[%s196 + $0x78] sm:$0xff]
        %v213 = vmul.f32 %v163, -1.658373
        %v214 = vmul.f32 %v164, -1.658373
        %v215 = vmul.f32 %v165, -1.658373
        %v216 = vmul.f32 %v166, -1.658373
        %v217 = vmul.f32 %v167, -1.658373
        %v218 = vmul.f32 %v168, -1.658373
        %v219 = vmul.f32 %v169, -1.658373
        %v220 = vmul.f32 %v170, -1.658373
        %v221 = vmul.f32 %v171, -1.658373
        %v222 = vmul.f32 %v172, -1.658373
        %v223 = vmul.f32 %v173, -1.658373
        %v224 = vmul.f32 %v174, -1.658373
        %v225 = vmul.f32 %v175, -1.658373
        %v226 = vmul.f32 %v176, -1.658373
        %v227 = vmul.f32 %v177, -1.658373
        %v228 = vmul.f32 %v178, -1.658373
        %v229 = vmul.f32 %v180, -1.413034
        %v230 = vmul.f32 %v181, -1.413034
        %v231 = vmul.f32 %v182, -1.413034
        %v232 = vmul.f32 %v183, -1.413034
        %v233 = vmul.f32 %v184, -1.413034
        %v234 = vmul.f32 %v185, -1.413034
        %v235 = vmul.f32 %v186, -1.413034
        %v236 = vmul.f32 %v187, -1.413034
        %v237 = vmul.f32 %v188, -1.413034
        %v238 = vmul.f32 %v189, -1.413034
        %v239 = vmul.f32 %v190, -1.413034
        %v240 = vmul.f32 %v191, -1.413034
        %v241 = vmul.f32 %v192, -1.413034
        %v242 = vmul.f32 %v193, -1.413034
        %v243 = vmul.f32 %v194, -1.413034
        %v244 = vmul.f32 %v195, -1.413034
        %v245 = vadd.f32 %v213, %v229
        %v246 = vadd.f32 %v214, %v230
        %v247 = vadd.f32 %v215, %v231
        %v248 = vadd.f32 %v216, %v232
        %v249 = vadd.f32 %v217, %v233
        %v250 = vadd.f32 %v218, %v234
        %v251 = vadd.f32 %v219, %v235
        %v252 = vadd.f32 %v220, %v236
        %v253 = vadd.f32 %v221, %v237
        %v254 = vadd.f32 %v222, %v238
        %v255 = vadd.f32 %v223, %v239
        %v256 = vadd.f32 %v224, %v240
        %v257 = vadd.f32 %v225, %v241
        %v258 = vadd.f32 %v226, %v242
        %v259 = vadd.f32 %v227, %v243
        %v260 = vadd.f32 %v228, %v244
        %v261 = vmul.f32 %v197, 0.14204103
        %v262 = vmul.f32 %v198, 0.14204103
        %v263 = vmul.f32 %v199, 0.14204103
        %v264 = vmul.f32 %v200, 0.14204103
        %v265 = vmul.f32 %v201, 0.14204103
        %v266 = vmul.f32 %v202, 0.14204103
        %v267 = vmul.f32 %v203, 0.14204103
        %v268 = vmul.f32 %v204, 0.14204103
        %v269 = vmul.f32 %v205, 0.14204103
        %v270 = vmul.f32 %v206, 0.14204103
        %v271 = vmul.f32 %v207, 0.14204103
        %v272 = vmul.f32 %v208, 0.14204103
        %v273 = vmul.f32 %v209, 0.14204103
        %v274 = vmul.f32 %v210, 0.14204103
        %v275 = vmul.f32 %v211, 0.14204103
        %v276 = vmul.f32 %v212, 0.14204103
        %v277 = vadd.f32 %v245, %v261
        %v278 = vadd.f32 %v246, %v262
        %v279 = vadd.f32 %v247, %v263
        %v280 = vadd.f32 %v248, %v264
        %v281 = vadd.f32 %v249, %v265
        %v282 = vadd.f32 %v250, %v266
        %v283 = vadd.f32 %v251, %v267
        %v284 = vadd.f32 %v252, %v268
        %v285 = vadd.f32 %v253, %v269
        %v286 = vadd.f32 %v254, %v270
        %v287 = vadd.f32 %v255, %v271
        %v288 = vadd.f32 %v256, %v272
        %v289 = vadd.f32 %v257, %v273
        %v290 = vadd.f32 %v258, %v274
        %v291 = vadd.f32 %v259, %v275
        %v292 = vadd.f32 %v260, %v276
        %v293 = vadd.f32 %v277, 1.4312764
        %v294 = vadd.f32 %v278, 1.4312764
        %v295 = vadd.f32 %v279, 1.4312764
        %v296 = vadd.f32 %v280, 1.4312764
        %v297 = vadd.f32 %v281, 1.4312764
        %v298 = vadd.f32 %v282, 1.4312764
        %v299 = vadd.f32 %v283, 1.4312764
        %v300 = vadd.f32 %v284, 1.4312764
        %v301 = vadd.f32 %v285, 1.4312764
        %v302 = vadd.f32 %v286, 1.4312764
        %v303 = vadd.f32 %v287, 1.4312764
        %v304 = vadd.f32 %v288, 1.4312764
        %v305 = vadd.f32 %v289, 1.4312764
        %v306 = vadd.f32 %v290, 1.4312764
        %v307 = vadd.f32 %v291, 1.4312764
        %v308 = vadd.f32 %v292, 1.4312764
        %v309 = vmax.f32 %v293, 0.0
        %v310 = vmax.f32 %v294, 0.0
        %v311 = vmax.f32 %v295, 0.0
        %v312 = vmax.f32 %v296, 0.0
        %v313 = vmax.f32 %v297, 0.0
        %v314 = vmax.f32 %v298, 0.0
        %v315 = vmax.f32 %v299, 0.0
        %v316 = vmax.f32 %v300, 0.0
        %v317 = vmax.f32 %v301, 0.0
        %v318 = vmax.f32 %v302, 0.0
        %v319 = vmax.f32 %v303, 0.0
        %v320 = vmax.f32 %v304, 0.0
        %v321 = vmax.f32 %v305, 0.0
        %v322 = vmax.f32 %v306, 0.0
        %v323 = vmax.f32 %v307, 0.0
        %v324 = vmax.f32 %v308, 0.0
        %v325 = vmul.f32 %v163, -0.24115677
        %v326 = vmul.f32 %v164, -0.24115677
        %v327 = vmul.f32 %v165, -0.24115677
        %v328 = vmul.f32 %v166, -0.24115677
        %v329 = vmul.f32 %v167, -0.24115677
        %v330 = vmul.f32 %v168, -0.24115677
        %v331 = vmul.f32 %v169, -0.24115677
        %v332 = vmul.f32 %v170, -0.24115677
        %v333 = vmul.f32 %v171, -0.24115677
        %v334 = vmul.f32 %v172, -0.24115677
        %v335 = vmul.f32 %v173, -0.24115677
        %v336 = vmul.f32 %v174, -0.24115677
        %v337 = vmul.f32 %v175, -0.24115677
        %v338 = vmul.f32 %v176, -0.24115677
        %v339 = vmul.f32 %v177, -0.24115677
        %v340 = vmul.f32 %v178, -0.24115677
        %v341 = vmul.f32 %v180, -0.5313443
        %v342 = vmul.f32 %v181, -0.5313443
        %v343 = vmul.f32 %v182, -0.5313443
        %v344 = vmul.f32 %v183, -0.5313443
        %v345 = vmul.f32 %v184, -0.5313443
        %v346 = vmul.f32 %v185, -0.5313443
        %v347 = vmul.f32 %v186, -0.5313443
        %v348 = vmul.f32 %v187, -0.5313443
        %v349 = vmul.f32 %v188, -0.5313443
        %v350 = vmul.f32 %v189, -0.5313443
        %v351 = vmul.f32 %v190, -0.5313443
        %v352 = vmul.f32 %v191, -0.5313443
        %v353 = vmul.f32 %v192, -0.5313443
        %v354 = vmul.f32 %v193, -0.5313443
        %v355 = vmul.f32 %v194, -0.5313443
        %v356 = vmul.f32 %v195, -0.5313443
        %v357 = vadd.f32 %v325, %v341
        %v358 = vadd.f32 %v326, %v342
        %v359 = vadd.f32 %v327, %v343
        %v360 = vadd.f32 %v328, %v344
        %v361 = vadd.f32 %v329, %v345
        %v362 = vadd.f32 %v330, %v346
        %v363 = vadd.f32 %v331, %v347
        %v364 = vadd.f32 %v332, %v348
        %v365 = vadd.f32 %v333, %v349
        %v366 = vadd.f32 %v334, %v350
        %v367 = vadd.f32 %v335, %v351
        %v368 = vadd.f32 %v336, %v352
        %v369 = vadd.f32 %v337, %v353
        %v370 = vadd.f32 %v338, %v354
        %v371 = vadd.f32 %v339, %v355
        %v372 = vadd.f32 %v340, %v356
        %v373 = vmul.f32 %v197, -0.8181822
        %v374 = vmul.f32 %v198, -0.8181822
        %v375 = vmul.f32 %v199, -0.8181822
        %v376 = vmul.f32 %v200, -0.8181822
        %v377 = vmul.f32 %v201, -0.8181822
        %v378 = vmul.f32 %v202, -0.8181822
        %v379 = vmul.f32 %v203, -0.8181822
        %v380 = vmul.f32 %v204, -0.8181822
        %v381 = vmul.f32 %v205, -0.8181822
        %v382 = vmul.f32 %v206, -0.8181822
        %v383 = vmul.f32 %v207, -0.8181822
        %v384 = vmul.f32 %v208, -0.8181822
        %v385 = vmul.f32 %v209, -0.8181822
        %v386 = vmul.f32 %v210, -0.8181822
        %v387 = vmul.f32 %v211, -0.8181822
        %v388 = vmul.f32 %v212, -0.8181822
        %v389 = vadd.f32 %v357, %v373
        %v390 = vadd.f32 %v358, %v374
        %v391 = vadd.f32 %v359, %v375
        %v392 = vadd.f32 %v360, %v376
        %v393 = vadd.f32 %v361, %v377
        %v394 = vadd.f32 %v362, %v378
        %v395 = vadd.f32 %v363, %v379
        %v396 = vadd.f32 %v364, %v380
        %v397 = vadd.f32 %v365, %v381
        %v398 = vadd.f32 %v366, %v382
        %v399 = vadd.f32 %v367, %v383
        %v400 = vadd.f32 %v368, %v384
        %v401 = vadd.f32 %v369, %v385
        %v402 = vadd.f32 %v370, %v386
        %v403 = vadd.f32 %v371, %v387
        %v404 = vadd.f32 %v372, %v388
        %v405 = vadd.f32 %v389, 0.7337668
        %v406 = vadd.f32 %v390, 0.7337668
        %v407 = vadd.f32 %v391, 0.7337668
        %v408 = vadd.f32 %v392, 0.7337668
        %v409 = vadd.f32 %v393, 0.7337668
        %v410 = vadd.f32 %v394, 0.7337668
        %v411 = vadd.f32 %v395, 0.7337668
        %v412 = vadd.f32 %v396, 0.7337668
        %v413 = vadd.f32 %v397, 0.7337668
        %v414 = vadd.f32 %v398, 0.7337668
        %v415 = vadd.f32 %v399, 0.7337668
        %v416 = vadd.f32 %v400, 0.7337668
        %v417 = vadd.f32 %v401, 0.7337668
        %v418 = vadd.f32 %v402, 0.7337668
        %v419 = vadd.f32 %v403, 0.7337668
        %v420 = vadd.f32 %v404, 0.7337668
        %v421 = vmax.f32 %v405, 0.0
        %v422 = vmax.f32 %v406, 0.0
        %v423 = vmax.f32 %v407, 0.0
        %v424 = vmax.f32 %v408, 0.0
        %v425 = vmax.f32 %v409, 0.0
        %v426 = vmax.f32 %v410, 0.0
        %v427 = vmax.f32 %v411, 0.0
        %v428 = vmax.f32 %v412, 0.0
        %v429 = vmax.f32 %v413, 0.0
        %v430 = vmax.f32 %v414, 0.0
        %v431 = vmax.f32 %v415, 0.0
        %v432 = vmax.f32 %v416, 0.0
        %v433 = vmax.f32 %v417, 0.0
        %v434 = vmax.f32 %v418, 0.0
        %v435 = vmax.f32 %v419, 0.0
        %v436 = vmax.f32 %v420, 0.0
        %v437 = vsub.f32 %v309, %v421
        %v438 = vsub.f32 %v310, %v422
        %v439 = vsub.f32 %v311, %v423
        %v440 = vsub.f32 %v312, %v424
        %v441 = vsub.f32 %v313, %v425
        %v442 = vsub.f32 %v314, %v426
        %v443 = vsub.f32 %v315, %v427
        %v444 = vsub.f32 %v316, %v428
        %v445 = vsub.f32 %v317, %v429
        %v446 = vsub.f32 %v318, %v430
        %v447 = vsub.f32 %v319, %v431
        %v448 = vsub.f32 %v320, %v432
        %v449 = vsub.f32 %v321, %v433
        %v450 = vsub.f32 %v322, %v434
        %v451 = vsub.f32 %v323, %v435
        %v452 = vsub.f32 %v324, %v436
        %v453 = vmul.f32 %v163, -2.108509
        %v454 = vmul.f32 %v164, -2.108509
        %v455 = vmul.f32 %v165, -2.108509
        %v456 = vmul.f32 %v166, -2.108509
        %v457 = vmul.f32 %v167, -2.108509
        %v458 = vmul.f32 %v168, -2.108509
        %v459 = vmul.f32 %v169, -2.108509
        %v460 = vmul.f32 %v170, -2.108509
        %v461 = vmul.f32 %v171, -2.108509
        %v462 = vmul.f32 %v172, -2.108509
        %v463 = vmul.f32 %v173, -2.108509
        %v464 = vmul.f32 %v174, -2.108509
        %v465 = vmul.f32 %v175, -2.108509
        %v466 = vmul.f32 %v176, -2.108509
        %v467 = vmul.f32 %v177, -2.108509
        %v468 = vmul.f32 %v178, -2.108509
        %v469 = vmul.f32 %v180, 0.55787486
        %v470 = vmul.f32 %v181, 0.55787486
        %v471 = vmul.f32 %v182, 0.55787486
        %v472 = vmul.f32 %v183, 0.55787486
        %v473 = vmul.f32 %v184, 0.55787486
        %v474 = vmul.f32 %v185, 0.55787486
        %v475 = vmul.f32 %v186, 0.55787486
        %v476 = vmul.f32 %v187, 0.55787486
        %v477 = vmul.f32 %v188, 0.55787486
        %v478 = vmul.f32 %v189, 0.55787486
        %v479 = vmul.f32 %v190, 0.55787486
        %v480 = vmul.f32 %v191, 0.55787486
        %v481 = vmul.f32 %v192, 0.55787486
        %v482 = vmul.f32 %v193, 0.55787486
        %v483 = vmul.f32 %v194, 0.55787486
        %v484 = vmul.f32 %v195, 0.55787486
        %v485 = vadd.f32 %v453, %v469
        %v486 = vadd.f32 %v454, %v470
        %v487 = vadd.f32 %v455, %v471
        %v488 = vadd.f32 %v456, %v472
        %v489 = vadd.f32 %v457, %v473
        %v490 = vadd.f32 %v458, %v474
        %v491 = vadd.f32 %v459, %v475
        %v492 = vadd.f32 %v460, %v476
        %v493 = vadd.f32 %v461, %v477
        %v494 = vadd.f32 %v462, %v478
        %v495 = vadd.f32 %v463, %v479
        %v496 = vadd.f32 %v464, %v480
        %v497 = vadd.f32 %v465, %v481
        %v498 = vadd.f32 %v466, %v482
        %v499 = vadd.f32 %v467, %v483
        %v500 = vadd.f32 %v468, %v484
        %v501 = vmul.f32 %v197, -2.449359
        %v502 = vmul.f32 %v198, -2.449359
        %v503 = vmul.f32 %v199, -2.449359
        %v504 = vmul.f32 %v200, -2.449359
        %v505 = vmul.f32 %v201, -2.449359
        %v506 = vmul.f32 %v202, -2.449359
        %v507 = vmul.f32 %v203, -2.449359
        %v508 = vmul.f32 %v204, -2.449359
        %v509 = vmul.f32 %v205, -2.449359
        %v510 = vmul.f32 %v206, -2.449359
        %v511 = vmul.f32 %v207, -2.449359
        %v512 = vmul.f32 %v208, -2.449359
        %v513 = vmul.f32 %v209, -2.449359
        %v514 = vmul.f32 %v210, -2.449359
        %v515 = vmul.f32 %v211, -2.449359
        %v516 = vmul.f32 %v212, -2.449359
        %v517 = vadd.f32 %v485, %v501
        %v518 = vadd.f32 %v486, %v502
        %v519 = vadd.f32 %v487, %v503
        %v520 = vadd.f32 %v488, %v504
        %v521 = vadd.f32 %v489, %v505
        %v522 = vadd.f32 %v490, %v506
        %v523 = vadd.f32 %v491, %v507
        %v524 = vadd.f32 %v492, %v508
        %v525 = vadd.f32 %v493, %v509
        %v526 = vadd.f32 %v494, %v510
        %v527 = vadd.f32 %v495, %v511
        %v528 = vadd.f32 %v496, %v512
        %v529 = vadd.f32 %v497, %v513
        %v530 = vadd.f32 %v498, %v514
        %v531 = vadd.f32 %v499, %v515
        %v532 = vadd.f32 %v500, %v516
        %v533 = vadd.f32 %v517, 1.7282263
        %v534 = vadd.f32 %v518, 1.7282263
        %v535 = vadd.f32 %v519, 1.7282263
        %v536 = vadd.f32 %v520, 1.7282263
        %v537 = vadd.f32 %v521, 1.7282263
        %v538 = vadd.f32 %v522, 1.7282263
        %v539 = vadd.f32 %v523, 1.7282263
        %v540 = vadd.f32 %v524, 1.7282263
        %v541 = vadd.f32 %v525, 1.7282263
        %v542 = vadd.f32 %v526, 1.7282263
        %v543 = vadd.f32 %v527, 1.7282263
        %v544 = vadd.f32 %v528, 1.7282263
        %v545 = vadd.f32 %v529, 1.7282263
        %v546 = vadd.f32 %v530, 1.7282263
        %v547 = vadd.f32 %v531, 1.7282263
        %v548 = vadd.f32 %v532, 1.7282263
        %v549 = vmax.f32 %v533, 0.0
        %v550 = vmax.f32 %v534, 0.0
        %v551 = vmax.f32 %v535, 0.0
        %v552 = vmax.f32 %v536, 0.0
        %v553 = vmax.f32 %v537, 0.0
        %v554 = vmax.f32 %v538, 0.0
        %v555 = vmax.f32 %v539, 0.0
        %v556 = vmax.f32 %v540, 0.0
        %v557 = vmax.f32 %v541, 0.0
        %v558 = vmax.f32 %v542, 0.0
        %v559 = vmax.f32 %v543, 0.0
        %v560 = vmax.f32 %v544, 0.0
        %v561 = vmax.f32 %v545, 0.0
        %v562 = vmax.f32 %v546, 0.0
        %v563 = vmax.f32 %v547, 0.0
        %v564 = vmax.f32 %v548, 0.0
        %v565 = vsub.f32 %v437, %v549
        %v566 = vsub.f32 %v438, %v550
        %v567 = vsub.f32 %v439, %v551
        %v568 = vsub.f32 %v440, %v552
        %v569 = vsub.f32 %v441, %v553
        %v570 = vsub.f32 %v442, %v554
        %v571 = vsub.f32 %v443, %v555
        %v572 = vsub.f32 %v444, %v556
        %v573 = vsub.f32 %v445, %v557
        %v574 = vsub.f32 %v446, %v558
        %v575 = vsub.f32 %v447, %v559
        %v576 = vsub.f32 %v448, %v560
        %v577 = vsub.f32 %v449, %v561
        %v578 = vsub.f32 %v450, %v562
        %v579 = vsub.f32 %v451, %v563
        %v580 = vsub.f32 %v452, %v564
        %v581 = vmul.f32 %v163, 1.879073
        %v582 = vmul.f32 %v164, 1.879073
        %v583 = vmul.f32 %v165, 1.879073
        %v584 = vmul.f32 %v166, 1.879073
        %v585 = vmul.f32 %v167, 1.879073
        %v586 = vmul.f32 %v168, 1.879073
        %v587 = vmul.f32 %v169, 1.879073
        %v588 = vmul.f32 %v170, 1.879073
        %v589 = vmul.f32 %v171, 1.879073
        %v590 = vmul.f32 %v172, 1.879073
        %v591 = vmul.f32 %v173, 1.879073
        %v592 = vmul.f32 %v174, 1.879073
        %v593 = vmul.f32 %v175, 1.879073
        %v594 = vmul.f32 %v176, 1.879073
        %v595 = vmul.f32 %v177, 1.879073
        %v596 = vmul.f32 %v178, 1.879073
        %v597 = vmul.f32 %v180, -0.17095634
        %v598 = vmul.f32 %v181, -0.17095634
        %v599 = vmul.f32 %v182, -0.17095634
        %v600 = vmul.f32 %v183, -0.17095634
        %v601 = vmul.f32 %v184, -0.17095634
        %v602 = vmul.f32 %v185, -0.17095634
        %v603 = vmul.f32 %v186, -0.17095634
        %v604 = vmul.f32 %v187, -0.17095634
        %v605 = vmul.f32 %v188, -0.17095634
        %v606 = vmul.f32 %v189, -0.17095634
        %v607 = vmul.f32 %v190, -0.17095634
        %v608 = vmul.f32 %v191, -0.17095634
        %v609 = vmul.f32 %v192, -0.17095634
        %v610 = vmul.f32 %v193, -0.17095634
        %v611 = vmul.f32 %v194, -0.17095634
        %v612 = vmul.f32 %v195, -0.17095634
        %v613 = vadd.f32 %v581, %v597
        %v614 = vadd.f32 %v582, %v598
        %v615 = vadd.f32 %v583, %v599
        %v616 = vadd.f32 %v584, %v600
        %v617 = vadd.f32 %v585, %v601
        %v618 = vadd.f32 %v586, %v602
        %v619 = vadd.f32 %v587, %v603
        %v620 = vadd.f32 %v588, %v604
        %v621 = vadd.f32 %v589, %v605
        %v622 = vadd.f32 %v590, %v606
        %v623 = vadd.f32 %v591, %v607
        %v624 = vadd.f32 %v592, %v608
        %v625 = vadd.f32 %v593, %v609
        %v626 = vadd.f32 %v594, %v610
        %v627 = vadd.f32 %v595, %v611
        %v628 = vadd.f32 %v596, %v612
        %v629 = vmul.f32 %v197, 0.8654824
        %v630 = vmul.f32 %v198, 0.8654824
        %v631 = vmul.f32 %v199, 0.8654824
        %v632 = vmul.f32 %v200, 0.8654824
        %v633 = vmul.f32 %v201, 0.8654824
        %v634 = vmul.f32 %v202, 0.8654824
        %v635 = vmul.f32 %v203, 0.8654824
        %v636 = vmul.f32 %v204, 0.8654824
        %v637 = vmul.f32 %v205, 0.8654824
        %v638 = vmul.f32 %v206, 0.8654824
        %v639 = vmul.f32 %v207, 0.8654824
        %v640 = vmul.f32 %v208, 0.8654824
        %v641 = vmul.f32 %v209, 0.8654824
        %v642 = vmul.f32 %v210, 0.8654824
        %v643 = vmul.f32 %v211, 0.8654824
        %v644 = vmul.f32 %v212, 0.8654824
        %v645 = vadd.f32 %v613, %v629
        %v646 = vadd.f32 %v614, %v630
        %v647 = vadd.f32 %v615, %v631
        %v648 = vadd.f32 %v616, %v632
        %v649 = vadd.f32 %v617, %v633
        %v650 = vadd.f32 %v618, %v634
        %v651 = vadd.f32 %v619, %v635
        %v652 = vadd.f32 %v620, %v636
        %v653 = vadd.f32 %v621, %v637
        %v654 = vadd.f32 %v622, %v638
        %v655 = vadd.f32 %v623, %v639
        %v656 = vadd.f32 %v624, %v640
        %v657 = vadd.f32 %v625, %v641
        %v658 = vadd.f32 %v626, %v642
        %v659 = vadd.f32 %v627, %v643
        %v660 = vadd.f32 %v628, %v644
        %v661 = vadd.f32 %v645, -1.2159648
        %v662 = vadd.f32 %v646, -1.2159648
        %v663 = vadd.f32 %v647, -1.2159648
        %v664 = vadd.f32 %v648, -1.2159648
        %v665 = vadd.f32 %v649, -1.2159648
        %v666 = vadd.f32 %v650, -1.2159648
        %v667 = vadd.f32 %v651, -1.2159648
        %v668 = vadd.f32 %v652, -1.2159648
        %v669 = vadd.f32 %v653, -1.2159648
        %v670 = vadd.f32 %v654, -1.2159648
        %v671 = vadd.f32 %v655, -1.2159648
        %v672 = vadd.f32 %v656, -1.2159648
        %v673 = vadd.f32 %v657, -1.2159648
        %v674 = vadd.f32 %v658, -1.2159648
        %v675 = vadd.f32 %v659, -1.2159648
        %v676 = vadd.f32 %v660, -1.2159648
        %v677 = vmax.f32 %v661, 0.0
        %v678 = vmax.f32 %v662, 0.0
        %v679 = vmax.f32 %v663, 0.0
        %v680 = vmax.f32 %v664, 0.0
        %v681 = vmax.f32 %v665, 0.0
        %v682 = vmax.f32 %v666, 0.0
        %v683 = vmax.f32 %v667, 0.0
        %v684 = vmax.f32 %v668, 0.0
        %v685 = vmax.f32 %v669, 0.0
        %v686 = vmax.f32 %v670, 0.0
        %v687 = vmax.f32 %v671, 0.0
        %v688 = vmax.f32 %v672, 0.0
        %v689 = vmax.f32 %v673, 0.0
        %v690 = vmax.f32 %v674, 0.0
        %v691 = vmax.f32 %v675, 0.0
        %v692 = vmax.f32 %v676, 0.0
        %v693 = vadd.f32 %v565, %v677
        %v694 = vadd.f32 %v566, %v678
        %v695 = vadd.f32 %v567, %v679
        %v696 = vadd.f32 %v568, %v680
        %v697 = vadd.f32 %v569, %v681
        %v698 = vadd.f32 %v570, %v682
        %v699 = vadd.f32 %v571, %v683
        %v700 = vadd.f32 %v572, %v684
        %v701 = vadd.f32 %v573, %v685
        %v702 = vadd.f32 %v574, %v686
        %v703 = vadd.f32 %v575, %v687
        %v704 = vadd.f32 %v576, %v688
        %v705 = vadd.f32 %v577, %v689
        %v706 = vadd.f32 %v578, %v690
        %v707 = vadd.f32 %v579, %v691
        %v708 = vadd.f32 %v580, %v692
        %v709 = vmul.f32 %v163, -3.3610113
        %v710 = vmul.f32 %v164, -3.3610113
        %v711 = vmul.f32 %v165, -3.3610113
        %v712 = vmul.f32 %v166, -3.3610113
        %v713 = vmul.f32 %v167, -3.3610113
        %v714 = vmul.f32 %v168, -3.3610113
        %v715 = vmul.f32 %v169, -3.3610113
        %v716 = vmul.f32 %v170, -3.3610113
        %v717 = vmul.f32 %v171, -3.3610113
        %v718 = vmul.f32 %v172, -3.3610113
        %v719 = vmul.f32 %v173, -3.3610113
        %v720 = vmul.f32 %v174, -3.3610113
        %v721 = vmul.f32 %v175, -3.3610113
        %v722 = vmul.f32 %v176, -3.3610113
        %v723 = vmul.f32 %v177, -3.3610113
        %v724 = vmul.f32 %v178, -3.3610113
        %v725 = vmul.f32 %v180, -1.9772017
        %v726 = vmul.f32 %v181, -1.9772017
        %v727 = vmul.f32 %v182, -1.9772017
        %v728 = vmul.f32 %v183, -1.9772017
        %v729 = vmul.f32 %v184, -1.9772017
        %v730 = vmul.f32 %v185, -1.9772017
        %v731 = vmul.f32 %v186, -1.9772017
        %v732 = vmul.f32 %v187, -1.9772017
        %v733 = vmul.f32 %v188, -1.9772017
        %v734 = vmul.f32 %v189, -1.9772017
        %v735 = vmul.f32 %v190, -1.9772017
        %v736 = vmul.f32 %v191, -1.9772017
        %v737 = vmul.f32 %v192, -1.9772017
        %v738 = vmul.f32 %v193, -1.9772017
        %v739 = vmul.f32 %v194, -1.9772017
        %v740 = vmul.f32 %v195, -1.9772017
        %v741 = vadd.f32 %v709, %v725
        %v742 = vadd.f32 %v710, %v726
        %v743 = vadd.f32 %v711, %v727
        %v744 = vadd.f32 %v712, %v728
        %v745 = vadd.f32 %v713, %v729
        %v746 = vadd.f32 %v714, %v730
        %v747 = vadd.f32 %v715, %v731
        %v748 = vadd.f32 %v716, %v732
        %v749 = vadd.f32 %v717, %v733
        %v750 = vadd.f32 %v718, %v734
        %v751 = vadd.f32 %v719, %v735
        %v752 = vadd.f32 %v720, %v736
        %v753 = vadd.f32 %v721, %v737
        %v754 = vadd.f32 %v722, %v738
        %v755 = vadd.f32 %v723, %v739
        %v756 = vadd.f32 %v724, %v740
        %v757 = vmul.f32 %v197, -0.98066163
        %v758 = vmul.f32 %v198, -0.98066163
        %v759 = vmul.f32 %v199, -0.98066163
        %v760 = vmul.f32 %v200, -0.98066163
        %v761 = vmul.f32 %v201, -0.98066163
        %v762 = vmul.f32 %v202, -0.98066163
        %v763 = vmul.f32 %v203, -0.98066163
        %v764 = vmul.f32 %v204, -0.98066163
        %v765 = vmul.f32 %v205, -0.98066163
        %v766 = vmul.f32 %v206, -0.98066163
        %v767 = vmul.f32 %v207, -0.98066163
        %v768 = vmul.f32 %v208, -0.98066163
        %v769 = vmul.f32 %v209, -0.98066163
        %v770 = vmul.f32 %v210, -0.98066163
        %v771 = vmul.f32 %v211, -0.98066163
        %v772 = vmul.f32 %v212, -0.98066163
        %v773 = vadd.f32 %v741, %v757
        %v774 = vadd.f32 %v742, %v758
        %v775 = vadd.f32 %v743, %v759
        %v776 = vadd.f32 %v744, %v760
        %v777 = vadd.f32 %v745, %v761
        %v778 = vadd.f32 %v746, %v762
        %v779 = vadd.f32 %v747, %v763
        %v780 = vadd.f32 %v748, %v764
        %v781 = vadd.f32 %v749, %v765
        %v782 = vadd.f32 %v750, %v766
        %v783 = vadd.f32 %v751, %v767
        %v784 = vadd.f32 %v752, %v768
        %v785 = vadd.f32 %v753, %v769
        %v786 = vadd.f32 %v754, %v770
        %v787 = vadd.f32 %v755, %v771
        %v788 = vadd.f32 %v756, %v772
        %v789 = vadd.f32 %v773, 2.9749126
        %v790 = vadd.f32 %v774, 2.9749126
        %v791 = vadd.f32 %v775, 2.9749126
        %v792 = vadd.f32 %v776, 2.9749126
        %v793 = vadd.f32 %v777, 2.9749126
        %v794 = vadd.f32 %v778, 2.9749126
        %v795 = vadd.f32 %v779, 2.9749126
        %v796 = vadd.f32 %v780, 2.9749126
        %v797 = vadd.f32 %v781, 2.9749126
        %v798 = vadd.f32 %v782, 2.9749126
        %v799 = vadd.f32 %v783, 2.9749126
        %v800 = vadd.f32 %v784, 2.9749126
        %v801 = vadd.f32 %v785, 2.9749126
        %v802 = vadd.f32 %v786, 2.9749126
        %v803 = vadd.f32 %v787, 2.9749126
        %v804 = vadd.f32 %v788, 2.9749126
        %v805 = vmax.f32 %v789, 0.0
        %v806 = vmax.f32 %v790, 0.0
        %v807 = vmax.f32 %v791, 0.0
        %v808 = vmax.f32 %v792, 0.0
        %v809 = vmax.f32 %v793, 0.0
        %v810 = vmax.f32 %v794, 0.0
        %v811 = vmax.f32 %v795, 0.0
        %v812 = vmax.f32 %v796, 0.0
        %v813 = vmax.f32 %v797, 0.0
        %v814 = vmax.f32 %v798, 0.0
        %v815 = vmax.f32 %v799, 0.0
        %v816 = vmax.f32 %v800, 0.0
        %v817 = vmax.f32 %v801, 0.0
        %v818 = vmax.f32 %v802, 0.0
        %v819 = vmax.f32 %v803, 0.0
        %v820 = vmax.f32 %v804, 0.0
        %v821 = vadd.f32 %v693, %v805
        %v822 = vadd.f32 %v694, %v806
        %v823 = vadd.f32 %v695, %v807
        %v824 = vadd.f32 %v696, %v808
        %v825 = vadd.f32 %v697, %v809
        %v826 = vadd.f32 %v698, %v810
        %v827 = vadd.f32 %v699, %v811
        %v828 = vadd.f32 %v700, %v812
        %v829 = vadd.f32 %v701, %v813
        %v830 = vadd.f32 %v702, %v814
        %v831 = vadd.f32 %v703, %v815
        %v832 = vadd.f32 %v704, %v816
        %v833 = vadd.f32 %v705, %v817
        %v834 = vadd.f32 %v706, %v818
        %v835 = vadd.f32 %v707, %v819
        %v836 = vadd.f32 %v708, %v820
        %v837 = vmul.f32 %v163, 0.43309683
        %v838 = vmul.f32 %v164, 0.43309683
        %v839 = vmul.f32 %v165, 0.43309683
        %v840 = vmul.f32 %v166, 0.43309683
        %v841 = vmul.f32 %v167, 0.43309683
        %v842 = vmul.f32 %v168, 0.43309683
        %v843 = vmul.f32 %v169, 0.43309683
        %v844 = vmul.f32 %v170, 0.43309683
        %v845 = vmul.f32 %v171, 0.43309683
        %v846 = vmul.f32 %v172, 0.43309683
        %v847 = vmul.f32 %v173, 0.43309683
        %v848 = vmul.f32 %v174, 0.43309683
        %v849 = vmul.f32 %v175, 0.43309683
        %v850 = vmul.f32 %v176, 0.43309683
        %v851 = vmul.f32 %v177, 0.43309683
        %v852 = vmul.f32 %v178, 0.43309683
        %v853 = vmul.f32 %v180, -1.1902282
        %v854 = vmul.f32 %v181, -1.1902282
        %v855 = vmul.f32 %v182, -1.1902282
        %v856 = vmul.f32 %v183, -1.1902282
        %v857 = vmul.f32 %v184, -1.1902282
        %v858 = vmul.f32 %v185, -1.1902282
        %v859 = vmul.f32 %v186, -1.1902282
        %v860 = vmul.f32 %v187, -1.1902282
        %v861 = vmul.f32 %v188, -1.1902282
        %v862 = vmul.f32 %v189, -1.1902282
        %v863 = vmul.f32 %v190, -1.1902282
        %v864 = vmul.f32 %v191, -1.1902282
        %v865 = vmul.f32 %v192, -1.1902282
        %v866 = vmul.f32 %v193, -1.1902282
        %v867 = vmul.f32 %v194, -1.1902282
        %v868 = vmul.f32 %v195, -1.1902282
        %v869 = vadd.f32 %v837, %v853
        %v870 = vadd.f32 %v838, %v854
        %v871 = vadd.f32 %v839, %v855
        %v872 = vadd.f32 %v840, %v856
        %v873 = vadd.f32 %v841, %v857
        %v874 = vadd.f32 %v842, %v858
        %v875 = vadd.f32 %v843, %v859
        %v876 = vadd.f32 %v844, %v860
        %v877 = vadd.f32 %v845, %v861
        %v878 = vadd.f32 %v846, %v862
        %v879 = vadd.f32 %v847, %v863
        %v880 = vadd.f32 %v848, %v864
        %v881 = vadd.f32 %v849, %v865
        %v882 = vadd.f32 %v850, %v866
        %v883 = vadd.f32 %v851, %v867
        %v884 = vadd.f32 %v852, %v868
        %v885 = vmul.f32 %v197, -0.0689437
        %v886 = vmul.f32 %v198, -0.0689437
        %v887 = vmul.f32 %v199, -0.0689437
        %v888 = vmul.f32 %v200, -0.0689437
        %v889 = vmul.f32 %v201, -0.0689437
        %v890 = vmul.f32 %v202, -0.0689437
        %v891 = vmul.f32 %v203, -0.0689437
        %v892 = vmul.f32 %v204, -0.0689437
        %v893 = vmul.f32 %v205, -0.0689437
        %v894 = vmul.f32 %v206, -0.0689437
        %v895 = vmul.f32 %v207, -0.0689437
        %v896 = vmul.f32 %v208, -0.0689437
        %v897 = vmul.f32 %v209, -0.0689437
        %v898 = vmul.f32 %v210, -0.0689437
        %v899 = vmul.f32 %v211, -0.0689437
        %v900 = vmul.f32 %v212, -0.0689437
        %v901 = vadd.f32 %v869, %v885
        %v902 = vadd.f32 %v870, %v886
        %v903 = vadd.f32 %v871, %v887
        %v904 = vadd.f32 %v872, %v888
        %v905 = vadd.f32 %v873, %v889
        %v906 = vadd.f32 %v874, %v890
        %v907 = vadd.f32 %v875, %v891
        %v908 = vadd.f32 %v876, %v892
        %v909 = vadd.f32 %v877, %v893
        %v910 = vadd.f32 %v878, %v894
        %v911 = vadd.f32 %v879, %v895
        %v912 = vadd.f32 %v880, %v896
        %v913 = vadd.f32 %v881, %v897
        %v914 = vadd.f32 %v882, %v898
        %v915 = vadd.f32 %v883, %v899
        %v916 = vadd.f32 %v884, %v900
        %v917 = vadd.f32 %v901, 0.36152944
        %v918 = vadd.f32 %v902, 0.36152944
        %v919 = vadd.f32 %v903, 0.36152944
        %v920 = vadd.f32 %v904, 0.36152944
        %v921 = vadd.f32 %v905, 0.36152944
        %v922 = vadd.f32 %v906, 0.36152944
        %v923 = vadd.f32 %v907, 0.36152944
        %v924 = vadd.f32 %v908, 0.36152944
        %v925 = vadd.f32 %v909, 0.36152944
        %v926 = vadd.f32 %v910, 0.36152944
        %v927 = vadd.f32 %v911, 0.36152944
        %v928 = vadd.f32 %v912, 0.36152944
        %v929 = vadd.f32 %v913, 0.36152944
        %v930 = vadd.f32 %v914, 0.36152944
        %v931 = vadd.f32 %v915, 0.36152944
        %v932 = vadd.f32 %v916, 0.36152944
        %v933 = vmax.f32 %v917, 0.0
        %v934 = vmax.f32 %v918, 0.0
        %v935 = vmax.f32 %v919, 0.0
        %v936 = vmax.f32 %v920, 0.0
        %v937 = vmax.f32 %v921, 0.0
        %v938 = vmax.f32 %v922, 0.0
        %v939 = vmax.f32 %v923, 0.0
        %v940 = vmax.f32 %v924, 0.0
        %v941 = vmax.f32 %v925, 0.0
        %v942 = vmax.f32 %v926, 0.0
        %v943 = vmax.f32 %v927, 0.0
        %v944 = vmax.f32 %v928, 0.0
        %v945 = vmax.f32 %v929, 0.0
        %v946 = vmax.f32 %v930, 0.0
        %v947 = vmax.f32 %v931, 0.0
        %v948 = vmax.f32 %v932, 0.0
        %v949 = vsub.f32 %v821, %v933
        %v950 = vsub.f32 %v822, %v934
        %v951 = vsub.f32 %v823, %v935
        %v952 = vsub.f32 %v824, %v936
        %v953 = vsub.f32 %v825, %v937
        %v954 = vsub.f32 %v826, %v938
        %v955 = vsub.f32 %v827, %v939
        %v956 = vsub.f32 %v828, %v940
        %v957 = vsub.f32 %v829, %v941
        %v958 = vsub.f32 %v830, %v942
        %v959 = vsub.f32 %v831, %v943
        %v960 = vsub.f32 %v832, %v944
        %v961 = vsub.f32 %v833, %v945
        %v962 = vsub.f32 %v834, %v946
        %v963 = vsub.f32 %v835, %v947
        %v964 = vsub.f32 %v836, %v948
        %v965 = vmul.f32 %v163, -1.5267795
        %v966 = vmul.f32 %v164, -1.5267795
        %v967 = vmul.f32 %v165, -1.5267795
        %v968 = vmul.f32 %v166, -1.5267795
        %v969 = vmul.f32 %v167, -1.5267795
        %v970 = vmul.f32 %v168, -1.5267795
        %v971 = vmul.f32 %v169, -1.5267795
        %v972 = vmul.f32 %v170, -1.5267795
        %v973 = vmul.f32 %v171, -1.5267795
        %v974 = vmul.f32 %v172, -1.5267795
        %v975 = vmul.f32 %v173, -1.5267795
        %v976 = vmul.f32 %v174, -1.5267795
        %v977 = vmul.f32 %v175, -1.5267795
        %v978 = vmul.f32 %v176, -1.5267795
        %v979 = vmul.f32 %v177, -1.5267795
        %v980 = vmul.f32 %v178, -1.5267795
        %v981 = vmul.f32 %v180, -3.1978734
        %v982 = vmul.f32 %v181, -3.1978734
        %v983 = vmul.f32 %v182, -3.1978734
        %v984 = vmul.f32 %v183, -3.1978734
        %v985 = vmul.f32 %v184, -3.1978734
        %v986 = vmul.f32 %v185, -3.1978734
        %v987 = vmul.f32 %v186, -3.1978734
        %v988 = vmul.f32 %v187, -3.1978734
        %v989 = vmul.f32 %v188, -3.1978734
        %v990 = vmul.f32 %v189, -3.1978734
        %v991 = vmul.f32 %v190, -3.1978734
        %v992 = vmul.f32 %v191, -3.1978734
        %v993 = vmul.f32 %v192, -3.1978734
        %v994 = vmul.f32 %v193, -3.1978734
        %v995 = vmul.f32 %v194, -3.1978734
        %v996 = vmul.f32 %v195, -3.1978734
        %v997 = vadd.f32 %v965, %v981
        %v998 = vadd.f32 %v966, %v982
        %v999 = vadd.f32 %v967, %v983
        %v1000 = vadd.f32 %v968, %v984
        %v1001 = vadd.f32 %v969, %v985
        %v1002 = vadd.f32 %v970, %v986
        %v1003 = vadd.f32 %v971, %v987
        %v1004 = vadd.f32 %v972, %v988
        %v1005 = vadd.f32 %v973, %v989
        %v1006 = vadd.f32 %v974, %v990
        %v1007 = vadd.f32 %v975, %v991
        %v1008 = vadd.f32 %v976, %v992
        %v1009 = vadd.f32 %v977, %v993
        %v1010 = vadd.f32 %v978, %v994
        %v1011 = vadd.f32 %v979, %v995
        %v1012 = vadd.f32 %v980, %v996
        %v1013 = vmul.f32 %v197, -1.7976185
        %v1014 = vmul.f32 %v198, -1.7976185
        %v1015 = vmul.f32 %v199, -1.7976185
        %v1016 = vmul.f32 %v200, -1.7976185
        %v1017 = vmul.f32 %v201, -1.7976185
        %v1018 = vmul.f32 %v202, -1.7976185
        %v1019 = vmul.f32 %v203, -1.7976185
        %v1020 = vmul.f32 %v204, -1.7976185
        %v1021 = vmul.f32 %v205, -1.7976185
        %v1022 = vmul.f32 %v206, -1.7976185
        %v1023 = vmul.f32 %v207, -1.7976185
        %v1024 = vmul.f32 %v208, -1.7976185
        %v1025 = vmul.f32 %v209, -1.7976185
        %v1026 = vmul.f32 %v210, -1.7976185
        %v1027 = vmul.f32 %v211, -1.7976185
        %v1028 = vmul.f32 %v212, -1.7976185
        %v1029 = vadd.f32 %v997, %v1013
        %v1030 = vadd.f32 %v998, %v1014
        %v1031 = vadd.f32 %v999, %v1015
        %v1032 = vadd.f32 %v1000, %v1016
        %v1033 = vadd.f32 %v1001, %v1017
        %v1034 = vadd.f32 %v1002, %v1018
        %v1035 = vadd.f32 %v1003, %v1019
        %v1036 = vadd.f32 %v1004, %v1020
        %v1037 = vadd.f32 %v1005, %v1021
        %v1038 = vadd.f32 %v1006, %v1022
        %v1039 = vadd.f32 %v1007, %v1023
        %v1040 = vadd.f32 %v1008, %v1024
        %v1041 = vadd.f32 %v1009, %v1025
        %v1042 = vadd.f32 %v1010, %v1026
        %v1043 = vadd.f32 %v1011, %v1027
        %v1044 = vadd.f32 %v1012, %v1028
        %v1045 = vadd.f32 %v1029, 2.9705749
        %v1046 = vadd.f32 %v1030, 2.9705749
        %v1047 = vadd.f32 %v1031, 2.9705749
        %v1048 = vadd.f32 %v1032, 2.9705749
        %v1049 = vadd.f32 %v1033, 2.9705749
        %v1050 = vadd.f32 %v1034, 2.9705749
        %v1051 = vadd.f32 %v1035, 2.9705749
        %v1052 = vadd.f32 %v1036, 2.9705749
        %v1053 = vadd.f32 %v1037, 2.9705749
        %v1054 = vadd.f32 %v1038, 2.9705749
        %v1055 = vadd.f32 %v1039, 2.9705749
        %v1056 = vadd.f32 %v1040, 2.9705749
        %v1057 = vadd.f32 %v1041, 2.9705749
        %v1058 = vadd.f32 %v1042, 2.9705749
        %v1059 = vadd.f32 %v1043, 2.9705749
        %v1060 = vadd.f32 %v1044, 2.9705749
        %v1061 = vmax.f32 %v1045, 0.0
        %v1062 = vmax.f32 %v1046, 0.0
        %v1063 = vmax.f32 %v1047, 0.0
        %v1064 = vmax.f32 %v1048, 0.0
        %v1065 = vmax.f32 %v1049, 0.0
        %v1066 = vmax.f32 %v1050, 0.0
        %v1067 = vmax.f32 %v1051, 0.0
        %v1068 = vmax.f32 %v1052, 0.0
        %v1069 = vmax.f32 %v1053, 0.0
        %v1070 = vmax.f32 %v1054, 0.0
        %v1071 = vmax.f32 %v1055, 0.0
        %v1072 = vmax.f32 %v1056, 0.0
        %v1073 = vmax.f32 %v1057, 0.0
        %v1074 = vmax.f32 %v1058, 0.0
        %v1075 = vmax.f32 %v1059, 0.0
        %v1076 = vmax.f32 %v1060, 0.0
        %v1077 = vsub.f32 %v949, %v1061
        %v1078 = vsub.f32 %v950, %v1062
        %v1079 = vsub.f32 %v951, %v1063
        %v1080 = vsub.f32 %v952, %v1064
        %v1081 = vsub.f32 %v953, %v1065
        %v1082 = vsub.f32 %v954, %v1066
        %v1083 = vsub.f32 %v955, %v1067
        %v1084 = vsub.f32 %v956, %v1068
        %v1085 = vsub.f32 %v957, %v1069
        %v1086 = vsub.f32 %v958, %v1070
        %v1087 = vsub.f32 %v959, %v1071
        %v1088 = vsub.f32 %v960, %v1072
        %v1089 = vsub.f32 %v961, %v1073
        %v1090 = vsub.f32 %v962, %v1074
        %v1091 = vsub.f32 %v963, %v1075
        %v1092 = vsub.f32 %v964, %v1076
        %v1093 = vmul.f32 %v163, -0.20934863
        %v1094 = vmul.f32 %v164, -0.20934863
        %v1095 = vmul.f32 %v165, -0.20934863
        %v1096 = vmul.f32 %v166, -0.20934863
        %v1097 = vmul.f32 %v167, -0.20934863
        %v1098 = vmul.f32 %v168, -0.20934863
        %v1099 = vmul.f32 %v169, -0.20934863
        %v1100 = vmul.f32 %v170, -0.20934863
        %v1101 = vmul.f32 %v171, -0.20934863
        %v1102 = vmul.f32 %v172, -0.20934863
        %v1103 = vmul.f32 %v173, -0.20934863
        %v1104 = vmul.f32 %v174, -0.20934863
        %v1105 = vmul.f32 %v175, -0.20934863
        %v1106 = vmul.f32 %v176, -0.20934863
        %v1107 = vmul.f32 %v177, -0.20934863
        %v1108 = vmul.f32 %v178, -0.20934863
        %v1109 = vmul.f32 %v180, 0.8842072
        %v1110 = vmul.f32 %v181, 0.8842072
        %v1111 = vmul.f32 %v182, 0.8842072
        %v1112 = vmul.f32 %v183, 0.8842072
        %v1113 = vmul.f32 %v184, 0.8842072
        %v1114 = vmul.f32 %v185, 0.8842072
        %v1115 = vmul.f32 %v186, 0.8842072
        %v1116 = vmul.f32 %v187, 0.8842072
        %v1117 = vmul.f32 %v188, 0.8842072
        %v1118 = vmul.f32 %v189, 0.8842072
        %v1119 = vmul.f32 %v190, 0.8842072
        %v1120 = vmul.f32 %v191, 0.8842072
        %v1121 = vmul.f32 %v192, 0.8842072
        %v1122 = vmul.f32 %v193, 0.8842072
        %v1123 = vmul.f32 %v194, 0.8842072
        %v1124 = vmul.f32 %v195, 0.8842072
        %v1125 = vadd.f32 %v1093, %v1109
        %v1126 = vadd.f32 %v1094, %v1110
        %v1127 = vadd.f32 %v1095, %v1111
        %v1128 = vadd.f32 %v1096, %v1112
        %v1129 = vadd.f32 %v1097, %v1113
        %v1130 = vadd.f32 %v1098, %v1114
        %v1131 = vadd.f32 %v1099, %v1115
        %v1132 = vadd.f32 %v1100, %v1116
        %v1133 = vadd.f32 %v1101, %v1117
        %v1134 = vadd.f32 %v1102, %v1118
        %v1135 = vadd.f32 %v1103, %v1119
        %v1136 = vadd.f32 %v1104, %v1120
        %v1137 = vadd.f32 %v1105, %v1121
        %v1138 = vadd.f32 %v1106, %v1122
        %v1139 = vadd.f32 %v1107, %v1123
        %v1140 = vadd.f32 %v1108, %v1124
        %v1141 = vmul.f32 %v197, 0.537456
        %v1142 = vmul.f32 %v198, 0.537456
        %v1143 = vmul.f32 %v199, 0.537456
        %v1144 = vmul.f32 %v200, 0.537456
        %v1145 = vmul.f32 %v201, 0.537456
        %v1146 = vmul.f32 %v202, 0.537456
        %v1147 = vmul.f32 %v203, 0.537456
        %v1148 = vmul.f32 %v204, 0.537456
        %v1149 = vmul.f32 %v205, 0.537456
        %v1150 = vmul.f32 %v206, 0.537456
        %v1151 = vmul.f32 %v207, 0.537456
        %v1152 = vmul.f32 %v208, 0.537456
        %v1153 = vmul.f32 %v209, 0.537456
        %v1154 = vmul.f32 %v210, 0.537456
        %v1155 = vmul.f32 %v211, 0.537456
        %v1156 = vmul.f32 %v212, 0.537456
        %v1157 = vadd.f32 %v1125, %v1141
        %v1158 = vadd.f32 %v1126, %v1142
        %v1159 = vadd.f32 %v1127, %v1143
        %v1160 = vadd.f32 %v1128, %v1144
        %v1161 = vadd.f32 %v1129, %v1145
        %v1162 = vadd.f32 %v1130, %v1146
        %v1163 = vadd.f32 %v1131, %v1147
        %v1164 = vadd.f32 %v1132, %v1148
        %v1165 = vadd.f32 %v1133, %v1149
        %v1166 = vadd.f32 %v1134, %v1150
        %v1167 = vadd.f32 %v1135, %v1151
        %v1168 = vadd.f32 %v1136, %v1152
        %v1169 = vadd.f32 %v1137, %v1153
        %v1170 = vadd.f32 %v1138, %v1154
        %v1171 = vadd.f32 %v1139, %v1155
        %v1172 = vadd.f32 %v1140, %v1156
        %v1173 = vadd.f32 %v1157, -0.5423015
        %v1174 = vadd.f32 %v1158, -0.5423015
        %v1175 = vadd.f32 %v1159, -0.5423015
        %v1176 = vadd.f32 %v1160, -0.5423015
        %v1177 = vadd.f32 %v1161, -0.5423015
        %v1178 = vadd.f32 %v1162, -0.5423015
        %v1179 = vadd.f32 %v1163, -0.5423015
        %v1180 = vadd.f32 %v1164, -0.5423015
        %v1181 = vadd.f32 %v1165, -0.5423015
        %v1182 = vadd.f32 %v1166, -0.5423015
        %v1183 = vadd.f32 %v1167, -0.5423015
        %v1184 = vadd.f32 %v1168, -0.5423015
        %v1185 = vadd.f32 %v1169, -0.5423015
        %v1186 = vadd.f32 %v1170, -0.5423015
        %v1187 = vadd.f32 %v1171, -0.5423015
        %v1188 = vadd.f32 %v1172, -0.5423015
        %v1189 = vmax.f32 %v1173, 0.0
        %v1190 = vmax.f32 %v1174, 0.0
        %v1191 = vmax.f32 %v1175, 0.0
        %v1192 = vmax.f32 %v1176, 0.0
        %v1193 = vmax.f32 %v1177, 0.0
        %v1194 = vmax.f32 %v1178, 0.0
        %v1195 = vmax.f32 %v1179, 0.0
        %v1196 = vmax.f32 %v1180, 0.0
        %v1197 = vmax.f32 %v1181, 0.0
        %v1198 = vmax.f32 %v1182, 0.0
        %v1199 = vmax.f32 %v1183, 0.0
        %v1200 = vmax.f32 %v1184, 0.0
        %v1201 = vmax.f32 %v1185, 0.0
        %v1202 = vmax.f32 %v1186, 0.0
        %v1203 = vmax.f32 %v1187, 0.0
        %v1204 = vmax.f32 %v1188, 0.0
        %v1205 = vadd.f32 %v1077, %v1189
        %v1206 = vadd.f32 %v1078, %v1190
        %v1207 = vadd.f32 %v1079, %v1191
        %v1208 = vadd.f32 %v1080, %v1192
        %v1209 = vadd.f32 %v1081, %v1193
        %v1210 = vadd.f32 %v1082, %v1194
        %v1211 = vadd.f32 %v1083, %v1195
        %v1212 = vadd.f32 %v1084, %v1196
        %v1213 = vadd.f32 %v1085, %v1197
        %v1214 = vadd.f32 %v1086, %v1198
        %v1215 = vadd.f32 %v1087, %v1199
        %v1216 = vadd.f32 %v1088, %v1200
        %v1217 = vadd.f32 %v1089, %v1201
        %v1218 = vadd.f32 %v1090, %v1202
        %v1219 = vadd.f32 %v1091, %v1203
        %v1220 = vadd.f32 %v1092, %v1204
        %v1221 = vadd.f32 %v1205, 0.10208853
        %v1222 = vadd.f32 %v1206, 0.10208853
        %v1223 = vadd.f32 %v1207, 0.10208853
        %v1224 = vadd.f32 %v1208, 0.10208853
        %v1225 = vadd.f32 %v1209, 0.10208853
        %v1226 = vadd.f32 %v1210, 0.10208853
        %v1227 = vadd.f32 %v1211, 0.10208853
        %v1228 = vadd.f32 %v1212, 0.10208853
        %v1229 = vadd.f32 %v1213, 0.10208853
        %v1230 = vadd.f32 %v1214, 0.10208853
        %v1231 = vadd.f32 %v1215, 0.10208853
        %v1232 = vadd.f32 %v1216, 0.10208853
        %v1233 = vadd.f32 %v1217, 0.10208853
        %v1234 = vadd.f32 %v1218, 0.10208853
        %v1235 = vadd.f32 %v1219, 0.10208853
        %v1236 = vadd.f32 %v1220, 0.10208853
        %v1237 = vmin.f32 %v1221, 60.0
        %v1238 = vmin.f32 %v1222, 60.0
        %v1239 = vmin.f32 %v1223, 60.0
        %v1240 = vmin.f32 %v1224, 60.0
        %v1241 = vmin.f32 %v1225, 60.0
        %v1242 = vmin.f32 %v1226, 60.0
        %v1243 = vmin.f32 %v1227, 60.0
        %v1244 = vmin.f32 %v1228, 60.0
        %v1245 = vmin.f32 %v1229, 60.0
        %v1246 = vmin.f32 %v1230, 60.0
        %v1247 = vmin.f32 %v1231, 60.0
        %v1248 = vmin.f32 %v1232, 60.0
        %v1249 = vmin.f32 %v1233, 60.0
        %v1250 = vmin.f32 %v1234, 60.0
        %v1251 = vmin.f32 %v1235, 60.0
        %v1252 = vmin.f32 %v1236, 60.0
        %v1253 = vmul.f32 %v1237, 1.442695
        %v1254 = vpow.pop %v1253
        %v1255 = vmul.f32 %v1238, 1.442695
        %v1256 = vpow.pop %v1255
        %v1257 = vmul.f32 %v1239, 1.442695
        %v1258 = vpow.pop %v1257
        %v1259 = vmul.f32 %v1240, 1.442695
        %v1260 = vpow.pop %v1259
        %v1261 = vmul.f32 %v1241, 1.442695
        %v1262 = vpow.pop %v1261
        %v1263 = vmul.f32 %v1242, 1.442695
        %v1264 = vpow.pop %v1263
        %v1265 = vmul.f32 %v1243, 1.442695
        %v1266 = vpow.pop %v1265
        %v1267 = vmul.f32 %v1244, 1.442695
        %v1268 = vpow.pop %v1267
        %v1269 = vmul.f32 %v1245, 1.442695
        %v1270 = vpow.pop %v1269
        %v1271 = vmul.f32 %v1246, 1.442695
        %v1272 = vpow.pop %v1271
        %v1273 = vmul.f32 %v1247, 1.442695
        %v1274 = vpow.pop %v1273
        %v1275 = vmul.f32 %v1248, 1.442695
        %v1276 = vpow.pop %v1275
        %v1277 = vmul.f32 %v1249, 1.442695
        %v1278 = vpow.pop %v1277
        %v1279 = vmul.f32 %v1250, 1.442695
        %v1280 = vpow.pop %v1279
        %v1281 = vmul.f32 %v1251, 1.442695
        %v1282 = vpow.pop %v1281
        %v1283 = vmul.f32 %v1252, 1.442695
        %v1284 = vpow.pop %v1283
        %v1285 = vadd.f32 %v1254, 1.0
        %v1286 = vadd.f32 %v1256, 1.0
        %v1287 = vadd.f32 %v1258, 1.0
        %v1288 = vadd.f32 %v1260, 1.0
        %v1289 = vadd.f32 %v1262, 1.0
        %v1290 = vadd.f32 %v1264, 1.0
        %v1291 = vadd.f32 %v1266, 1.0
        %v1292 = vadd.f32 %v1268, 1.0
        %v1293 = vadd.f32 %v1270, 1.0
        %v1294 = vadd.f32 %v1272, 1.0
        %v1295 = vadd.f32 %v1274, 1.0
        %v1296 = vadd.f32 %v1276, 1.0
        %v1297 = vadd.f32 %v1278, 1.0
        %v1298 = vadd.f32 %v1280, 1.0
        %v1299 = vadd.f32 %v1282, 1.0
        %v1300 = vadd.f32 %v1284, 1.0
        %v1301 = vrcp.pop %v1285
        %v1302 = vrcp.pop %v1286
        %v1303 = vrcp.pop %v1287
        %v1304 = vrcp.pop %v1288
        %v1305 = vrcp.pop %v1289
        %v1306 = vrcp.pop %v1290
        %v1307 = vrcp.pop %v1291
        %v1308 = vrcp.pop %v1292
        %v1309 = vrcp.pop %v1293
        %v1310 = vrcp.pop %v1294
        %v1311 = vrcp.pop %v1295
        %v1312 = vrcp.pop %v1296
        %v1313 = vrcp.pop %v1297
        %v1314 = vrcp.pop %v1298
        %v1315 = vrcp.pop %v1299
        %v1316 = vrcp.pop %v1300
        %v1317 = vsub.f32 1.0, %v1301
        %v1318 = vsub.f32 1.0, %v1302
        %v1319 = vsub.f32 1.0, %v1303
        %v1320 = vsub.f32 1.0, %v1304
        %v1321 = vsub.f32 1.0, %v1305
        %v1322 = vsub.f32 1.0, %v1306
        %v1323 = vsub.f32 1.0, %v1307
        %v1324 = vsub.f32 1.0, %v1308
        %v1325 = vsub.f32 1.0, %v1309
        %v1326 = vsub.f32 1.0, %v1310
        %v1327 = vsub.f32 1.0, %v1311
        %v1328 = vsub.f32 1.0, %v1312
        %v1329 = vsub.f32 1.0, %v1313
        %v1330 = vsub.f32 1.0, %v1314
        %v1331 = vsub.f32 1.0, %v1315
        %v1332 = vsub.f32 1.0, %v1316
        %v1333 = vmul.f32 %v163, %v1301
        %v1334 = vmul.f32 %v164, %v1302
        %v1335 = vmul.f32 %v165, %v1303
        %v1336 = vmul.f32 %v166, %v1304
        %v1337 = vmul.f32 %v167, %v1305
        %v1338 = vmul.f32 %v168, %v1306
        %v1339 = vmul.f32 %v169, %v1307
        %v1340 = vmul.f32 %v170, %v1308
        %v1341 = vmul.f32 %v171, %v1309
        %v1342 = vmul.f32 %v172, %v1310
        %v1343 = vmul.f32 %v173, %v1311
        %v1344 = vmul.f32 %v174, %v1312
        %v1345 = vmul.f32 %v175, %v1313
        %v1346 = vmul.f32 %v176, %v1314
        %v1347 = vmul.f32 %v177, %v1315
        %v1348 = vmul.f32 %v178, %v1316
        %v1349 = vadd.f32 %v1333, %v1317
        %v1350 = vadd.f32 %v1334, %v1318
        %v1351 = vadd.f32 %v1335, %v1319
        %v1352 = vadd.f32 %v1336, %v1320
        %v1353 = vadd.f32 %v1337, %v1321
        %v1354 = vadd.f32 %v1338, %v1322
        %v1355 = vadd.f32 %v1339, %v1323
        %v1356 = vadd.f32 %v1340, %v1324
        %v1357 = vadd.f32 %v1341, %v1325
        %v1358 = vadd.f32 %v1342, %v1326
        %v1359 = vadd.f32 %v1343, %v1327
        %v1360 = vadd.f32 %v1344, %v1328
        %v1361 = vadd.f32 %v1345, %v1329
        %v1362 = vadd.f32 %v1346, %v1330
        %v1363 = vadd.f32 %v1347, %v1331
        %v1364 = vadd.f32 %v1348, %v1332
        %1365 = vst [vmem:[%s160] sm:$0xff] %v1349
        %1366 = vst [vmem:[%s160 + $0x8] sm:$0xff] %v1350
        %1367 = vst [vmem:[%s160 + $0x10] sm:$0xff] %v1351
        %1368 = vst [vmem:[%s160 + $0x18] sm:$0xff] %v1352
        %1369 = vst [vmem:[%s160 + $0x20] sm:$0xff] %v1353
        %1370 = vst [vmem:[%s160 + $0x28] sm:$0xff] %v1354
        %1371 = vst [vmem:[%s160 + $0x30] sm:$0xff] %v1355
        %1372 = vst [vmem:[%s160 + $0x38] sm:$0xff] %v1356
        %1373 = vst [vmem:[%s160 + $0x40] sm:$0xff] %v1357
        %1374 = vst [vmem:[%s160 + $0x48] sm:$0xff] %v1358
        %1375 = vst [vmem:[%s160 + $0x50] sm:$0xff] %v1359
        %1376 = vst [vmem:[%s160 + $0x58] sm:$0xff] %v1360
        %1377 = vst [vmem:[%s160 + $0x60] sm:$0xff] %v1361
        %1378 = vst [vmem:[%s160 + $0x68] sm:$0xff] %v1362
        %1379 = vst [vmem:[%s160 + $0x70] sm:$0xff] %v1363
        %1380 = vst [vmem:[%s160 + $0x78] sm:$0xff] %v1364
        %v1381 = vld [vmem:[%s179] sm:$0xff]
        %v1382 = vld [vmem:[%s179 + $0x8] sm:$0xff]
        %v1383 = vld [vmem:[%s179 + $0x10] sm:$0xff]
        %v1384 = vld [vmem:[%s179 + $0x18] sm:$0xff]
        %v1385 = vld [vmem:[%s179 + $0x20] sm:$0xff]
        %v1386 = vld [vmem:[%s179 + $0x28] sm:$0xff]
        %v1387 = vld [vmem:[%s179 + $0x30] sm:$0xff]
        %v1388 = vld [vmem:[%s179 + $0x38] sm:$0xff]
        %v1389 = vld [vmem:[%s179 + $0x40] sm:$0xff]
        %v1390 = vld [vmem:[%s179 + $0x48] sm:$0xff]
        %v1391 = vld [vmem:[%s179 + $0x50] sm:$0xff]
        %v1392 = vld [vmem:[%s179 + $0x58] sm:$0xff]
        %v1393 = vld [vmem:[%s179 + $0x60] sm:$0xff]
        %v1394 = vld [vmem:[%s179 + $0x68] sm:$0xff]
        %v1395 = vld [vmem:[%s179 + $0x70] sm:$0xff]
        %v1396 = vld [vmem:[%s179 + $0x78] sm:$0xff]
        %v1397 = vmul.f32 %v1381, %v1301
        %v1398 = vmul.f32 %v1382, %v1302
        %v1399 = vmul.f32 %v1383, %v1303
        %v1400 = vmul.f32 %v1384, %v1304
        %v1401 = vmul.f32 %v1385, %v1305
        %v1402 = vmul.f32 %v1386, %v1306
        %v1403 = vmul.f32 %v1387, %v1307
        %v1404 = vmul.f32 %v1388, %v1308
        %v1405 = vmul.f32 %v1389, %v1309
        %v1406 = vmul.f32 %v1390, %v1310
        %v1407 = vmul.f32 %v1391, %v1311
        %v1408 = vmul.f32 %v1392, %v1312
        %v1409 = vmul.f32 %v1393, %v1313
        %v1410 = vmul.f32 %v1394, %v1314
        %v1411 = vmul.f32 %v1395, %v1315
        %v1412 = vmul.f32 %v1396, %v1316
        %v1413 = vadd.f32 %v1397, %v1317
        %v1414 = vadd.f32 %v1398, %v1318
        %v1415 = vadd.f32 %v1399, %v1319
        %v1416 = vadd.f32 %v1400, %v1320
        %v1417 = vadd.f32 %v1401, %v1321
        %v1418 = vadd.f32 %v1402, %v1322
        %v1419 = vadd.f32 %v1403, %v1323
        %v1420 = vadd.f32 %v1404, %v1324
        %v1421 = vadd.f32 %v1405, %v1325
        %v1422 = vadd.f32 %v1406, %v1326
        %v1423 = vadd.f32 %v1407, %v1327
        %v1424 = vadd.f32 %v1408, %v1328
        %v1425 = vadd.f32 %v1409, %v1329
        %v1426 = vadd.f32 %v1410, %v1330
        %v1427 = vadd.f32 %v1411, %v1331
        %v1428 = vadd.f32 %v1412, %v1332
        %s1429 = scalar_lea.vmem %s160, 128 [#allocation5]
        %1430 = vst [vmem:[%s1429] sm:$0xff] %v1413
        %1431 = vst [vmem:[%s1429 + $0x8] sm:$0xff] %v1414
        %1432 = vst [vmem:[%s1429 + $0x10] sm:$0xff] %v1415
        %1433 = vst [vmem:[%s1429 + $0x18] sm:$0xff] %v1416
        %1434 = vst [vmem:[%s1429 + $0x20] sm:$0xff] %v1417
        %1435 = vst [vmem:[%s1429 + $0x28] sm:$0xff] %v1418
        %1436 = vst [vmem:[%s1429 + $0x30] sm:$0xff] %v1419
        %1437 = vst [vmem:[%s1429 + $0x38] sm:$0xff] %v1420
        %1438 = vst [vmem:[%s1429 + $0x40] sm:$0xff] %v1421
        %1439 = vst [vmem:[%s1429 + $0x48] sm:$0xff] %v1422
        %1440 = vst [vmem:[%s1429 + $0x50] sm:$0xff] %v1423
        %1441 = vst [vmem:[%s1429 + $0x58] sm:$0xff] %v1424
        %1442 = vst [vmem:[%s1429 + $0x60] sm:$0xff] %v1425
        %1443 = vst [vmem:[%s1429 + $0x68] sm:$0xff] %v1426
        %1444 = vst [vmem:[%s1429 + $0x70] sm:$0xff] %v1427
        %1445 = vst [vmem:[%s1429 + $0x78] sm:$0xff] %v1428
        %v1446 = vld [vmem:[%s196] sm:$0xff]
        %v1447 = vld [vmem:[%s196 + $0x8] sm:$0xff]
        %v1448 = vld [vmem:[%s196 + $0x10] sm:$0xff]
        %v1449 = vld [vmem:[%s196 + $0x18] sm:$0xff]
        %v1450 = vld [vmem:[%s196 + $0x20] sm:$0xff]
        %v1451 = vld [vmem:[%s196 + $0x28] sm:$0xff]
        %v1452 = vld [vmem:[%s196 + $0x30] sm:$0xff]
        %v1453 = vld [vmem:[%s196 + $0x38] sm:$0xff]
        %v1454 = vld [vmem:[%s196 + $0x40] sm:$0xff]
        %v1455 = vld [vmem:[%s196 + $0x48] sm:$0xff]
        %v1456 = vld [vmem:[%s196 + $0x50] sm:$0xff]
        %v1457 = vld [vmem:[%s196 + $0x58] sm:$0xff]
        %v1458 = vld [vmem:[%s196 + $0x60] sm:$0xff]
        %v1459 = vld [vmem:[%s196 + $0x68] sm:$0xff]
        %v1460 = vld [vmem:[%s196 + $0x70] sm:$0xff]
        %v1461 = vld [vmem:[%s196 + $0x78] sm:$0xff]
        %v1462 = vmul.f32 %v1446, %v1301
        %v1463 = vmul.f32 %v1447, %v1302
        %v1464 = vmul.f32 %v1448, %v1303
        %v1465 = vmul.f32 %v1449, %v1304
        %v1466 = vmul.f32 %v1450, %v1305
        %v1467 = vmul.f32 %v1451, %v1306
        %v1468 = vmul.f32 %v1452, %v1307
        %v1469 = vmul.f32 %v1453, %v1308
        %v1470 = vmul.f32 %v1454, %v1309
        %v1471 = vmul.f32 %v1455, %v1310
        %v1472 = vmul.f32 %v1456, %v1311
        %v1473 = vmul.f32 %v1457, %v1312
        %v1474 = vmul.f32 %v1458, %v1313
        %v1475 = vmul.f32 %v1459, %v1314
        %v1476 = vmul.f32 %v1460, %v1315
        %v1477 = vmul.f32 %v1461, %v1316
        %v1478 = vadd.f32 %v1462, %v1317
        %v1479 = vadd.f32 %v1463, %v1318
        %v1480 = vadd.f32 %v1464, %v1319
        %v1481 = vadd.f32 %v1465, %v1320
        %v1482 = vadd.f32 %v1466, %v1321
        %v1483 = vadd.f32 %v1467, %v1322
        %v1484 = vadd.f32 %v1468, %v1323
        %v1485 = vadd.f32 %v1469, %v1324
        %v1486 = vadd.f32 %v1470, %v1325
        %v1487 = vadd.f32 %v1471, %v1326
        %v1488 = vadd.f32 %v1472, %v1327
        %v1489 = vadd.f32 %v1473, %v1328
        %v1490 = vadd.f32 %v1474, %v1329
        %v1491 = vadd.f32 %v1475, %v1330
        %v1492 = vadd.f32 %v1476, %v1331
        %v1493 = vadd.f32 %v1477, %v1332
        %s1494 = scalar_lea.vmem %s160, 256 [#allocation5]
        %1495 = vst [vmem:[%s1494] sm:$0xff] %v1478
        %1496 = vst [vmem:[%s1494 + $0x8] sm:$0xff] %v1479
        %1497 = vst [vmem:[%s1494 + $0x10] sm:$0xff] %v1480
        %1498 = vst [vmem:[%s1494 + $0x18] sm:$0xff] %v1481
        %1499 = vst [vmem:[%s1494 + $0x20] sm:$0xff] %v1482
        %1500 = vst [vmem:[%s1494 + $0x28] sm:$0xff] %v1483
        %1501 = vst [vmem:[%s1494 + $0x30] sm:$0xff] %v1484
        %1502 = vst [vmem:[%s1494 + $0x38] sm:$0xff] %v1485
        %1503 = vst [vmem:[%s1494 + $0x40] sm:$0xff] %v1486
        %1504 = vst [vmem:[%s1494 + $0x48] sm:$0xff] %v1487
        %1505 = vst [vmem:[%s1494 + $0x50] sm:$0xff] %v1488
        %1506 = vst [vmem:[%s1494 + $0x58] sm:$0xff] %v1489
        %1507 = vst [vmem:[%s1494 + $0x60] sm:$0xff] %v1490
        %1508 = vst [vmem:[%s1494 + $0x68] sm:$0xff] %v1491
        %1509 = vst [vmem:[%s1494 + $0x70] sm:$0xff] %v1492
        %1510 = vst [vmem:[%s1494 + $0x78] sm:$0xff] %v1493
        %s1511 = sand.u32 %s52, 1
        %s1512 = scalar_lea.sflag [#allocation4], %s1511
        %s1513 = sand.u32 %s52, 1
        %s1514 = smul.addr %s1513, 384
        %s1515 = scalar_lea.vmem [#allocation5], %s1514
        // Predicated region
        $region29: #{tpu_custom_call.1} parent=23 // pred_check
          %p1516 = pneg %p62
        $region30: #{tpu_custom_call.1} parent=23 // pred_check_branch
          %1518 = sbr.rel (%p1516) target = $region32
        $region31: #{tpu_custom_call.1} parent=23 // pred_region
          #allocation9 [shape = 'u32[6]{0}', space=smem, size = 0x18, scoped, tag = 'DMA stride descriptor']
          %s1519 = smul.u32 8, %s18
          %s1521 = ssub.s32 6144, 6144
          %1522 = vsyncadd %s1512, %s1521
          %s1523 = smul.addr %s1519, 2
          %s1524 = smul.addr %s1523, 128
          %s1525 = scalar_lea.hbm %s1, %s1524
          %s1527 = sshll.u32 1, 14
          %s1528 = sxor.u32 4294967295, %s1527
          %s1531 = sshll.u32 7, 18
          %s1532 = sxor.u32 4294967295, %s1531
          %s1533 = sand.u32 0, %s1532
          %s1535 = sor.u32 %s1533, 0
          %s1537 = sshll.u32 3, 24
          %s1538 = sxor.u32 4294967295, %s1537
          %s1539 = sand.u32 %s1535, %s1538
          %s1541 = sor.u32 %s1539, 0
          %s1542 = sshll.u32 %s1515, 4
          %s1543 = int_to_ptr.vmem [resolvable:$true] %s1542
          %1549 = sst [smem:[#allocation9]] 2048
          %s1550 = scalar_lea.smem [#allocation9], 1
          %1551 = sst [smem:[%s1550]] 8192
          %s1552 = scalar_lea.smem [#allocation9], 2
          %1553 = sst [smem:[%s1552]] 8
          %s1554 = scalar_lea.smem [#allocation9], 3
          %1555 = sst [smem:[%s1554]] 256
          %s1556 = scalar_lea.smem [#allocation9], 4
          %1557 = sst [smem:[%s1556]] 256
          %s1558 = scalar_lea.smem [#allocation9], 5
          %1559 = sst [smem:[%s1558]] 16
          %1561 = dma.general %s1543, 6144, %s1525, %s1512, [#allocation8], [#allocation9], %s1541, 0
        $region32: #{tpu_custom_call.1} parent=23 // pred_fallthru
          _
      $region24: #{tpu_custom_call.1} parent=5 // pred_fallthru
        _
      %p1562 = scmp.le.s32.totalorder 2, %s13
      // Predicated region
      $region33: #{tpu_custom_call.1} parent=5 // pred_check
        %p1563 = pneg %p1562
      $region34: #{tpu_custom_call.1} parent=5 // pred_check_branch
        %1565 = sbr.rel (%p1563) target = $region36
      $region35: #{tpu_custom_call.1} parent=5 // pred_region
        %s1566 = ssub.s32 %s13, 2
        // Predicated region
        $region37: #{tpu_custom_call.1} parent=35 // pred_check
          %p1567 = pneg %p68
        $region38: #{tpu_custom_call.1} parent=35 // pred_check_branch
          %1569 = sbr.rel (%p1567) target = $region40
        $region39: #{tpu_custom_call.1} parent=35 // pred_region
          %s1570 = sand.u32 %s53, 1
          %s1571 = scalar_lea.sflag [#allocation4], %s1570
          %s1572 = sand.u32 %s53, 1
          %s1573 = smul.addr %s1572, 384
          %s1574 = scalar_lea.vmem [#allocation5], %s1573
          %1575 = dma.done %s1571, 6144
        $region40: #{tpu_custom_call.1} parent=35 // pred_fallthru
          _
      $region36: #{tpu_custom_call.1} parent=5 // pred_fallthru
        _
    $region6: #{tpu_custom_call.1} parent=1 // loop_footer
      %s17 = sadd.s32 1, %s13
    $region7: #{tpu_custom_call.1} parent=1 // loop_footer_branch
      %12 = sbr.rel target = $region3
    $region8: #{tpu_custom_call.1} parent=1 // loop_exit
      _
    %1576 = vsyncpa [#allocation3], 1
    %s1577 = scalar_lea.sflag [#allocation3], 1
    %1578 = vsyncpa %s1577, 1
    %1579 = vsyncpa [#allocation4], 1
    %s1580 = scalar_lea.sflag [#allocation4], 1
    %1581 = vsyncpa %s1580, 1

</llo_original>
